<compile_context>
chip_gen: v7x
topology: tpu7x:2x2x1
jax: 0.10.0
libtpu: 0.0.40
codegen_flags: <defaults>
</compile_context>

<pallas_src>
import functools

import jax
import jax.numpy as jnp
from jax.experimental import pallas as pl
from jax.experimental.pallas import tpu as pltpu


# ----------------------------------------------------------------------------
# Fused Pallas kernel (all layers + heads, no grid)
# ----------------------------------------------------------------------------
def _make_fused_kernel(n_layers, S, B, H, F):
    """Kernel factory.  Ref layout:
         refs[0]                      : x_flat  (S*B, I)
         refs[1 + 4*l : 1 + 4*(l+1)]  : layer l  (w_ih_t, w_hh_t, b_ih, b_hh)
         refs[-3], refs[-2]           : w_head (H, 2F), b_head (1, 2F)
         refs[-1]                     : out (B, 2F)   [mu | sigma]
    """

    def kernel(*refs):
        x_ref = refs[0]
        w_head_ref = refs[-3]
        b_head_ref = refs[-2]
        out_ref = refs[-1]

        h_in = x_ref[...]                                   # (S*B, I) layer input
        h = jnp.zeros((B, H), jnp.float32)

        for layer in range(n_layers):
            base = 1 + 4 * layer
            wih = refs[base][...]                           # (I_l, 3H)
            whh = refs[base + 1][...]                       # (H,   3H)
            bih = refs[base + 2][...]                       # (1,   3H)
            bhh = refs[base + 3][...]                       # (1,   3H)

            # Hoisted input projection: one big MXU matmul for the whole
            # sequence; b_ih folded in here, off the serial path.
            gx_all = jnp.dot(h_in, wih,
                             preferred_element_type=jnp.float32) + bih  # (S*B, 3H)

            h = jnp.zeros((B, H), jnp.float32)              # h0 = 0 (PyTorch default)
            outs = []
            last_layer = layer == n_layers - 1

            # Static (unrolled) time loop: only h @ W_hh + gate math is serial.
            for t in range(S):
                gx = gx_all[t * B:(t + 1) * B, :]           # (B, 3H)
                gh = jnp.dot(h, whh,
                             preferred_element_type=jnp.float32) + bhh
                # PyTorch gate order: r, z, n
                r = jax.nn.sigmoid(gx[:, 0 * H:1 * H] + gh[:, 0 * H:1 * H])
                z = jax.nn.sigmoid(gx[:, 1 * H:2 * H] + gh[:, 1 * H:2 * H])
                n = jnp.tanh(gx[:, 2 * H:3 * H] + r * gh[:, 2 * H:3 * H])
                h = (1.0 - z) * n + z * h
                if not last_layer:
                    outs.append(h)

            if not last_layer:
                h_in = jnp.concatenate(outs, axis=0)        # (S*B, H) next-layer input

        # Fused factor-posterior heads: one (H, 2F) matmul, softplus on the
        # sigma half via a lane mask, single store.
        head = jnp.dot(h, w_head_ref[...],
                       preferred_element_type=jnp.float32) + b_head_ref[...]  # (B, 2F)
        lane = jax.lax.broadcasted_iota(jnp.int32, head.shape, dimension=1)
        out_ref[...] = jnp.where(lane < F, head, jax.nn.softplus(head))

    return kernel


# ----------------------------------------------------------------------------
# Wrapper / parameters
# ----------------------------------------------------------------------------
def init_params(key, input_size, hidden_size, n_factors, n_layers):
    """Deterministic parameter init (uniform, PyTorch-style scale)."""
    params = {"gru": []}
    scale = 1.0 / jnp.sqrt(hidden_size)
    for layer in range(n_layers):
        in_sz = input_size if layer == 0 else hidden_size
        key, k1, k2, k3, k4 = jax.random.split(key, 5)
        params["gru"].append(dict(
            w_ih_t=jax.random.uniform(k1, (in_sz, 3 * hidden_size),
                                      jnp.float32, -scale, scale),
            w_hh_t=jax.random.uniform(k2, (hidden_size, 3 * hidden_size),
                                      jnp.float32, -scale, scale),
            b_ih=jax.random.uniform(k3, (1, 3 * hidden_size),
                                    jnp.float32, -scale, scale),
            b_hh=jax.random.uniform(k4, (1, 3 * hidden_size),
                                    jnp.float32, -scale, scale),
        ))
    key, k1, k2, k3, k4 = jax.random.split(key, 5)
    params["w_mu_t"] = jax.random.uniform(k1, (hidden_size, n_factors),
                                          jnp.float32, -scale, scale)
    params["b_mu"] = jax.random.uniform(k2, (1, n_factors),
                                        jnp.float32, -scale, scale)
    params["w_sig_t"] = jax.random.uniform(k3, (hidden_size, n_factors),
                                           jnp.float32, -scale, scale)
    params["b_sig"] = jax.random.uniform(k4, (1, n_factors),
                                         jnp.float32, -scale, scale)
    return params


@jax.jit
def factor_encoder_forward(params, x, factors):
    """x: (S, B, input_size) time-major; factors: unused (see TODO above)."""
    del factors
    n_layers = len(params["gru"])
    S, B, I = x.shape
    H = params["gru"][0]["w_hh_t"].shape[0]
    F = params["w_mu_t"].shape[1]

    x_flat = x.astype(jnp.float32).reshape(S * B, I)
    w_head = jnp.concatenate([params["w_mu_t"], params["w_sig_t"]], axis=1)   # (H, 2F)
    b_head = jnp.concatenate([params["b_mu"], params["b_sig"]], axis=1)       # (1, 2F)

    flat_args = [x_flat]
    for lp in params["gru"]:
        flat_args += [lp["w_ih_t"], lp["w_hh_t"], lp["b_ih"], lp["b_hh"]]
    flat_args += [w_head, b_head]

    kernel = _make_fused_kernel(n_layers, S, B, H, F)
    out = pl.pallas_call(
        kernel,
        out_shape=jax.ShapeDtypeStruct((B, 2 * F), jnp.float32),
        compiler_params=pltpu.CompilerParams(),
    )(*flat_args)

    return out[:, :F], out[:, F:]


# ----------------------------------------------------------------------------
# Pure-JAX reference for correctness checking.
# ----------------------------------------------------------------------------
def _reference_forward(params, x):
    def cell(h, x_t, lp):
        H = h.shape[-1]
        gx = x_t @ lp["w_ih_t"] + lp["b_ih"]
        gh = h @ lp["w_hh_t"] + lp["b_hh"]
        r = jax.nn.sigmoid(gx[:, :H] + gh[:, :H])
        z = jax.nn.sigmoid(gx[:, H:2 * H] + gh[:, H:2 * H])
        n = jnp.tanh(gx[:, 2 * H:] + r * gh[:, 2 * H:])
        return (1.0 - z) * n + z * h

    h_seq = x
    for lp in params["gru"]:
        B = x.shape[1]
        H = lp["w_hh_t"].shape[0]
        h = jnp.zeros((B, H), jnp.float32)
        outs = []
        for t in range(h_seq.shape[0]):
            h = cell(h, h_seq[t], lp)
            outs.append(h)
        h_seq = jnp.stack(outs, axis=0)
    h_last = h_seq[-1]
    mu = h_last @ params["w_mu_t"] + params["b_mu"]
    sigma = jax.nn.softplus(h_last @ params["w_sig_t"] + params["b_sig"])
    return mu, sigma


if __name__ == "__main__":
    # Small shapes consistent with the module's constructor.
    seq, batch = 8, 2
    input_size, hidden_size, n_factors, n_layers = 16, 32, 4, 2

    key = jax.random.PRNGKey(0)
    key, kx, kf, kp = jax.random.split(key, 4)
    x = jax.random.normal(kx, (seq, batch, input_size), jnp.float32)
    factors = jax.random.normal(kf, (batch, n_factors), jnp.float32)  # unused
    params = init_params(kp, input_size, hidden_size, n_factors, n_layers)

    mu, sigma = factor_encoder_forward(params, x, factors)
    mu, sigma = jax.block_until_ready((mu, sigma))

    mu_ref, sigma_ref = _reference_forward(params, x)
    assert jnp.allclose(mu, mu_ref, rtol=1e-4, atol=1e-4), "mu mismatch"
    assert jnp.allclose(sigma, sigma_ref, rtol=1e-4, atol=1e-4), "sigma mismatch"

    print("KERNEL_OK")
</pallas_src>

<mosaic_0001>
module attributes {stable_mosaic.version = 11 : i64} {
  func.func @kernel(%arg0: memref<16x16xf32, #tpu.memory_space<vmem>>, %arg1: memref<16x96xf32, #tpu.memory_space<vmem>>, %arg2: memref<32x96xf32, #tpu.memory_space<vmem>>, %arg3: memref<1x96xf32, #tpu.memory_space<vmem>>, %arg4: memref<1x96xf32, #tpu.memory_space<vmem>>, %arg5: memref<32x96xf32, #tpu.memory_space<vmem>>, %arg6: memref<32x96xf32, #tpu.memory_space<vmem>>, %arg7: memref<1x96xf32, #tpu.memory_space<vmem>>, %arg8: memref<1x96xf32, #tpu.memory_space<vmem>>, %arg9: memref<32x8xf32, #tpu.memory_space<vmem>>, %arg10: memref<1x8xf32, #tpu.memory_space<vmem>>, %arg11: memref<2x8xf32, #tpu.memory_space<vmem>>) attributes {dimension_semantics = [], scalar_prefetch = 0 : i64, scratch_operands = 0 : i64, tpu.core_type = #tpu.core_type<tc>} {
    %c0 = arith.constant 0 : index
    %c0_0 = arith.constant 0 : index
    %0 = vector.load %arg0[%c0, %c0_0] : memref<16x16xf32, #tpu.memory_space<vmem>>, vector<16x16xf32>
    %c0_1 = arith.constant 0 : index
    %c0_2 = arith.constant 0 : index
    %1 = vector.load %arg1[%c0_1, %c0_2] : memref<16x96xf32, #tpu.memory_space<vmem>>, vector<16x96xf32>
    %c0_3 = arith.constant 0 : index
    %c0_4 = arith.constant 0 : index
    %2 = vector.load %arg2[%c0_3, %c0_4] : memref<32x96xf32, #tpu.memory_space<vmem>>, vector<32x96xf32>
    %c0_5 = arith.constant 0 : index
    %c0_6 = arith.constant 0 : index
    %3 = vector.load %arg3[%c0_5, %c0_6] : memref<1x96xf32, #tpu.memory_space<vmem>>, vector<1x96xf32>
    %c0_7 = arith.constant 0 : index
    %c0_8 = arith.constant 0 : index
    %4 = vector.load %arg4[%c0_7, %c0_8] : memref<1x96xf32, #tpu.memory_space<vmem>>, vector<1x96xf32>
    %cst = arith.constant dense<0.000000e+00> : vector<16x96xf32>
    %5 = tpu.matmul %0, %1, %cst {dimension_numbers = #tpu.dot_dimension_numbers<[1], [0], [0], [1], [0, 0, 1, 1], [], []>} : vector<16x16xf32>, vector<16x96xf32>, vector<16x96xf32> -> vector<16x96xf32>
    %6 = vector.broadcast %3 : vector<1x96xf32> to vector<16x96xf32>
    %7 = arith.addf %5, %6 : vector<16x96xf32>
    %cst_9 = arith.constant 0.000000e+00 : f32
    %8 = vector.broadcast %cst_9 : f32 to vector<2x32xf32>
    %9 = vector.extract_strided_slice %7 {offsets = [0, 0], sizes = [2, 96], strides = [1, 1]} : vector<16x96xf32> to vector<2x96xf32>
    %cst_10 = arith.constant dense<0.000000e+00> : vector<2x96xf32>
    %10 = tpu.matmul %8, %2, %cst_10 {dimension_numbers = #tpu.dot_dimension_numbers<[1], [0], [0], [1], [0, 0, 1, 1], [], []>} : vector<2x32xf32>, vector<32x96xf32>, vector<2x96xf32> -> vector<2x96xf32>
    %11 = vector.broadcast %4 : vector<1x96xf32> to vector<2x96xf32>
    %12 = arith.addf %10, %11 : vector<2x96xf32>
    %13 = vector.extract_strided_slice %9 {offsets = [0, 0], sizes = [2, 32], strides = [1, 1]} : vector<2x96xf32> to vector<2x32xf32>
    %14 = vector.extract_strided_slice %12 {offsets = [0, 0], sizes = [2, 32], strides = [1, 1]} : vector<2x96xf32> to vector<2x32xf32>
    %15 = arith.addf %13, %14 : vector<2x32xf32>
    %16 = arith.negf %15 : vector<2x32xf32>
    %17 = math.exp %16 : vector<2x32xf32>
    %cst_11 = arith.constant 1.000000e+00 : f32
    %18 = vector.broadcast %cst_11 : f32 to vector<2x32xf32>
    %19 = arith.addf %18, %17 : vector<2x32xf32>
    %20 = arith.divf %18, %19 : vector<2x32xf32>
    %21 = vector.extract_strided_slice %9 {offsets = [0, 32], sizes = [2, 32], strides = [1, 1]} : vector<2x96xf32> to vector<2x32xf32>
    %22 = vector.extract_strided_slice %12 {offsets = [0, 32], sizes = [2, 32], strides = [1, 1]} : vector<2x96xf32> to vector<2x32xf32>
    %23 = arith.addf %21, %22 : vector<2x32xf32>
    %24 = arith.negf %23 : vector<2x32xf32>
    %25 = math.exp %24 : vector<2x32xf32>
    %cst_12 = arith.constant 1.000000e+00 : f32
    %26 = vector.broadcast %cst_12 : f32 to vector<2x32xf32>
    %27 = arith.addf %26, %25 : vector<2x32xf32>
    %28 = arith.divf %26, %27 : vector<2x32xf32>
    %29 = vector.extract_strided_slice %9 {offsets = [0, 64], sizes = [2, 32], strides = [1, 1]} : vector<2x96xf32> to vector<2x32xf32>
    %30 = vector.extract_strided_slice %12 {offsets = [0, 64], sizes = [2, 32], strides = [1, 1]} : vector<2x96xf32> to vector<2x32xf32>
    %31 = arith.mulf %20, %30 : vector<2x32xf32>
    %32 = arith.addf %29, %31 : vector<2x32xf32>
    %33 = math.tanh %32 : vector<2x32xf32>
    %cst_13 = arith.constant 1.000000e+00 : f32
    %34 = vector.broadcast %cst_13 : f32 to vector<2x32xf32>
    %35 = arith.subf %34, %28 : vector<2x32xf32>
    %36 = arith.mulf %35, %33 : vector<2x32xf32>
    %37 = arith.mulf %28, %8 : vector<2x32xf32>
    %38 = arith.addf %36, %37 : vector<2x32xf32>
    %39 = vector.extract_strided_slice %7 {offsets = [2, 0], sizes = [2, 96], strides = [1, 1]} : vector<16x96xf32> to vector<2x96xf32>
    %cst_14 = arith.constant dense<0.000000e+00> : vector<2x96xf32>
    %40 = tpu.matmul %38, %2, %cst_14 {dimension_numbers = #tpu.dot_dimension_numbers<[1], [0], [0], [1], [0, 0, 1, 1], [], []>} : vector<2x32xf32>, vector<32x96xf32>, vector<2x96xf32> -> vector<2x96xf32>
    %41 = vector.broadcast %4 : vector<1x96xf32> to vector<2x96xf32>
    %42 = arith.addf %40, %41 : vector<2x96xf32>
    %43 = vector.extract_strided_slice %39 {offsets = [0, 0], sizes = [2, 32], strides = [1, 1]} : vector<2x96xf32> to vector<2x32xf32>
    %44 = vector.extract_strided_slice %42 {offsets = [0, 0], sizes = [2, 32], strides = [1, 1]} : vector<2x96xf32> to vector<2x32xf32>
    %45 = arith.addf %43, %44 : vector<2x32xf32>
    %46 = arith.negf %45 : vector<2x32xf32>
    %47 = math.exp %46 : vector<2x32xf32>
    %cst_15 = arith.constant 1.000000e+00 : f32
    %48 = vector.broadcast %cst_15 : f32 to vector<2x32xf32>
    %49 = arith.addf %48, %47 : vector<2x32xf32>
    %50 = arith.divf %48, %49 : vector<2x32xf32>
    %51 = vector.extract_strided_slice %39 {offsets = [0, 32], sizes = [2, 32], strides = [1, 1]} : vector<2x96xf32> to vector<2x32xf32>
    %52 = vector.extract_strided_slice %42 {offsets = [0, 32], sizes = [2, 32], strides = [1, 1]} : vector<2x96xf32> to vector<2x32xf32>
    %53 = arith.addf %51, %52 : vector<2x32xf32>
    %54 = arith.negf %53 : vector<2x32xf32>
    %55 = math.exp %54 : vector<2x32xf32>
    %cst_16 = arith.constant 1.000000e+00 : f32
    %56 = vector.broadcast %cst_16 : f32 to vector<2x32xf32>
    %57 = arith.addf %56, %55 : vector<2x32xf32>
    %58 = arith.divf %56, %57 : vector<2x32xf32>
    %59 = vector.extract_strided_slice %39 {offsets = [0, 64], sizes = [2, 32], strides = [1, 1]} : vector<2x96xf32> to vector<2x32xf32>
    %60 = vector.extract_strided_slice %42 {offsets = [0, 64], sizes = [2, 32], strides = [1, 1]} : vector<2x96xf32> to vector<2x32xf32>
    %61 = arith.mulf %50, %60 : vector<2x32xf32>
    %62 = arith.addf %59, %61 : vector<2x32xf32>
    %63 = math.tanh %62 : vector<2x32xf32>
    %cst_17 = arith.constant 1.000000e+00 : f32
    %64 = vector.broadcast %cst_17 : f32 to vector<2x32xf32>
    %65 = arith.subf %64, %58 : vector<2x32xf32>
    %66 = arith.mulf %65, %63 : vector<2x32xf32>
    %67 = arith.mulf %58, %38 : vector<2x32xf32>
    %68 = arith.addf %66, %67 : vector<2x32xf32>
    %69 = vector.extract_strided_slice %7 {offsets = [4, 0], sizes = [2, 96], strides = [1, 1]} : vector<16x96xf32> to vector<2x96xf32>
    %cst_18 = arith.constant dense<0.000000e+00> : vector<2x96xf32>
    %70 = tpu.matmul %68, %2, %cst_18 {dimension_numbers = #tpu.dot_dimension_numbers<[1], [0], [0], [1], [0, 0, 1, 1], [], []>} : vector<2x32xf32>, vector<32x96xf32>, vector<2x96xf32> -> vector<2x96xf32>
    %71 = vector.broadcast %4 : vector<1x96xf32> to vector<2x96xf32>
    %72 = arith.addf %70, %71 : vector<2x96xf32>
    %73 = vector.extract_strided_slice %69 {offsets = [0, 0], sizes = [2, 32], strides = [1, 1]} : vector<2x96xf32> to vector<2x32xf32>
    %74 = vector.extract_strided_slice %72 {offsets = [0, 0], sizes = [2, 32], strides = [1, 1]} : vector<2x96xf32> to vector<2x32xf32>
    %75 = arith.addf %73, %74 : vector<2x32xf32>
    %76 = arith.negf %75 : vector<2x32xf32>
    %77 = math.exp %76 : vector<2x32xf32>
    %cst_19 = arith.constant 1.000000e+00 : f32
    %78 = vector.broadcast %cst_19 : f32 to vector<2x32xf32>
    %79 = arith.addf %78, %77 : vector<2x32xf32>
    %80 = arith.divf %78, %79 : vector<2x32xf32>
    %81 = vector.extract_strided_slice %69 {offsets = [0, 32], sizes = [2, 32], strides = [1, 1]} : vector<2x96xf32> to vector<2x32xf32>
    %82 = vector.extract_strided_slice %72 {offsets = [0, 32], sizes = [2, 32], strides = [1, 1]} : vector<2x96xf32> to vector<2x32xf32>
    %83 = arith.addf %81, %82 : vector<2x32xf32>
    %84 = arith.negf %83 : vector<2x32xf32>
    %85 = math.exp %84 : vector<2x32xf32>
    %cst_20 = arith.constant 1.000000e+00 : f32
    %86 = vector.broadcast %cst_20 : f32 to vector<2x32xf32>
    %87 = arith.addf %86, %85 : vector<2x32xf32>
    %88 = arith.divf %86, %87 : vector<2x32xf32>
    %89 = vector.extract_strided_slice %69 {offsets = [0, 64], sizes = [2, 32], strides = [1, 1]} : vector<2x96xf32> to vector<2x32xf32>
    %90 = vector.extract_strided_slice %72 {offsets = [0, 64], sizes = [2, 32], strides = [1, 1]} : vector<2x96xf32> to vector<2x32xf32>
    %91 = arith.mulf %80, %90 : vector<2x32xf32>
    %92 = arith.addf %89, %91 : vector<2x32xf32>
    %93 = math.tanh %92 : vector<2x32xf32>
    %cst_21 = arith.constant 1.000000e+00 : f32
    %94 = vector.broadcast %cst_21 : f32 to vector<2x32xf32>
    %95 = arith.subf %94, %88 : vector<2x32xf32>
    %96 = arith.mulf %95, %93 : vector<2x32xf32>
    %97 = arith.mulf %88, %68 : vector<2x32xf32>
    %98 = arith.addf %96, %97 : vector<2x32xf32>
    %99 = vector.extract_strided_slice %7 {offsets = [6, 0], sizes = [2, 96], strides = [1, 1]} : vector<16x96xf32> to vector<2x96xf32>
    %cst_22 = arith.constant dense<0.000000e+00> : vector<2x96xf32>
    %100 = tpu.matmul %98, %2, %cst_22 {dimension_numbers = #tpu.dot_dimension_numbers<[1], [0], [0], [1], [0, 0, 1, 1], [], []>} : vector<2x32xf32>, vector<32x96xf32>, vector<2x96xf32> -> vector<2x96xf32>
    %101 = vector.broadcast %4 : vector<1x96xf32> to vector<2x96xf32>
    %102 = arith.addf %100, %101 : vector<2x96xf32>
    %103 = vector.extract_strided_slice %99 {offsets = [0, 0], sizes = [2, 32], strides = [1, 1]} : vector<2x96xf32> to vector<2x32xf32>
    %104 = vector.extract_strided_slice %102 {offsets = [0, 0], sizes = [2, 32], strides = [1, 1]} : vector<2x96xf32> to vector<2x32xf32>
    %105 = arith.addf %103, %104 : vector<2x32xf32>
    %106 = arith.negf %105 : vector<2x32xf32>
    %107 = math.exp %106 : vector<2x32xf32>
    %cst_23 = arith.constant 1.000000e+00 : f32
    %108 = vector.broadcast %cst_23 : f32 to vector<2x32xf32>
    %109 = arith.addf %108, %107 : vector<2x32xf32>
    %110 = arith.divf %108, %109 : vector<2x32xf32>
    %111 = vector.extract_strided_slice %99 {offsets = [0, 32], sizes = [2, 32], strides = [1, 1]} : vector<2x96xf32> to vector<2x32xf32>
    %112 = vector.extract_strided_slice %102 {offsets = [0, 32], sizes = [2, 32], strides = [1, 1]} : vector<2x96xf32> to vector<2x32xf32>
    %113 = arith.addf %111, %112 : vector<2x32xf32>
    %114 = arith.negf %113 : vector<2x32xf32>
    %115 = math.exp %114 : vector<2x32xf32>
    %cst_24 = arith.constant 1.000000e+00 : f32
    %116 = vector.broadcast %cst_24 : f32 to vector<2x32xf32>
    %117 = arith.addf %116, %115 : vector<2x32xf32>
    %118 = arith.divf %116, %117 : vector<2x32xf32>
    %119 = vector.extract_strided_slice %99 {offsets = [0, 64], sizes = [2, 32], strides = [1, 1]} : vector<2x96xf32> to vector<2x32xf32>
    %120 = vector.extract_strided_slice %102 {offsets = [0, 64], sizes = [2, 32], strides = [1, 1]} : vector<2x96xf32> to vector<2x32xf32>
    %121 = arith.mulf %110, %120 : vector<2x32xf32>
    %122 = arith.addf %119, %121 : vector<2x32xf32>
    %123 = math.tanh %122 : vector<2x32xf32>
    %cst_25 = arith.constant 1.000000e+00 : f32
    %124 = vector.broadcast %cst_25 : f32 to vector<2x32xf32>
    %125 = arith.subf %124, %118 : vector<2x32xf32>
    %126 = arith.mulf %125, %123 : vector<2x32xf32>
    %127 = arith.mulf %118, %98 : vector<2x32xf32>
    %128 = arith.addf %126, %127 : vector<2x32xf32>
    %129 = vector.extract_strided_slice %7 {offsets = [8, 0], sizes = [2, 96], strides = [1, 1]} : vector<16x96xf32> to vector<2x96xf32>
    %cst_26 = arith.constant dense<0.000000e+00> : vector<2x96xf32>
    %130 = tpu.matmul %128, %2, %cst_26 {dimension_numbers = #tpu.dot_dimension_numbers<[1], [0], [0], [1], [0, 0, 1, 1], [], []>} : vector<2x32xf32>, vector<32x96xf32>, vector<2x96xf32> -> vector<2x96xf32>
    %131 = vector.broadcast %4 : vector<1x96xf32> to vector<2x96xf32>
    %132 = arith.addf %130, %131 : vector<2x96xf32>
    %133 = vector.extract_strided_slice %129 {offsets = [0, 0], sizes = [2, 32], strides = [1, 1]} : vector<2x96xf32> to vector<2x32xf32>
    %134 = vector.extract_strided_slice %132 {offsets = [0, 0], sizes = [2, 32], strides = [1, 1]} : vector<2x96xf32> to vector<2x32xf32>
    %135 = arith.addf %133, %134 : vector<2x32xf32>
    %136 = arith.negf %135 : vector<2x32xf32>
    %137 = math.exp %136 : vector<2x32xf32>
    %cst_27 = arith.constant 1.000000e+00 : f32
    %138 = vector.broadcast %cst_27 : f32 to vector<2x32xf32>
    %139 = arith.addf %138, %137 : vector<2x32xf32>
    %140 = arith.divf %138, %139 : vector<2x32xf32>
    %141 = vector.extract_strided_slice %129 {offsets = [0, 32], sizes = [2, 32], strides = [1, 1]} : vector<2x96xf32> to vector<2x32xf32>
    %142 = vector.extract_strided_slice %132 {offsets = [0, 32], sizes = [2, 32], strides = [1, 1]} : vector<2x96xf32> to vector<2x32xf32>
    %143 = arith.addf %141, %142 : vector<2x32xf32>
    %144 = arith.negf %143 : vector<2x32xf32>
    %145 = math.exp %144 : vector<2x32xf32>
    %cst_28 = arith.constant 1.000000e+00 : f32
    %146 = vector.broadcast %cst_28 : f32 to vector<2x32xf32>
    %147 = arith.addf %146, %145 : vector<2x32xf32>
    %148 = arith.divf %146, %147 : vector<2x32xf32>
    %149 = vector.extract_strided_slice %129 {offsets = [0, 64], sizes = [2, 32], strides = [1, 1]} : vector<2x96xf32> to vector<2x32xf32>
    %150 = vector.extract_strided_slice %132 {offsets = [0, 64], sizes = [2, 32], strides = [1, 1]} : vector<2x96xf32> to vector<2x32xf32>
    %151 = arith.mulf %140, %150 : vector<2x32xf32>
    %152 = arith.addf %149, %151 : vector<2x32xf32>
    %153 = math.tanh %152 : vector<2x32xf32>
    %cst_29 = arith.constant 1.000000e+00 : f32
    %154 = vector.broadcast %cst_29 : f32 to vector<2x32xf32>
    %155 = arith.subf %154, %148 : vector<2x32xf32>
    %156 = arith.mulf %155, %153 : vector<2x32xf32>
    %157 = arith.mulf %148, %128 : vector<2x32xf32>
    %158 = arith.addf %156, %157 : vector<2x32xf32>
    %159 = vector.extract_strided_slice %7 {offsets = [10, 0], sizes = [2, 96], strides = [1, 1]} : vector<16x96xf32> to vector<2x96xf32>
    %cst_30 = arith.constant dense<0.000000e+00> : vector<2x96xf32>
    %160 = tpu.matmul %158, %2, %cst_30 {dimension_numbers = #tpu.dot_dimension_numbers<[1], [0], [0], [1], [0, 0, 1, 1], [], []>} : vector<2x32xf32>, vector<32x96xf32>, vector<2x96xf32> -> vector<2x96xf32>
    %161 = vector.broadcast %4 : vector<1x96xf32> to vector<2x96xf32>
    %162 = arith.addf %160, %161 : vector<2x96xf32>
    %163 = vector.extract_strided_slice %159 {offsets = [0, 0], sizes = [2, 32], strides = [1, 1]} : vector<2x96xf32> to vector<2x32xf32>
    %164 = vector.extract_strided_slice %162 {offsets = [0, 0], sizes = [2, 32], strides = [1, 1]} : vector<2x96xf32> to vector<2x32xf32>
    %165 = arith.addf %163, %164 : vector<2x32xf32>
    %166 = arith.negf %165 : vector<2x32xf32>
    %167 = math.exp %166 : vector<2x32xf32>
    %cst_31 = arith.constant 1.000000e+00 : f32
    %168 = vector.broadcast %cst_31 : f32 to vector<2x32xf32>
    %169 = arith.addf %168, %167 : vector<2x32xf32>
    %170 = arith.divf %168, %169 : vector<2x32xf32>
    %171 = vector.extract_strided_slice %159 {offsets = [0, 32], sizes = [2, 32], strides = [1, 1]} : vector<2x96xf32> to vector<2x32xf32>
    %172 = vector.extract_strided_slice %162 {offsets = [0, 32], sizes = [2, 32], strides = [1, 1]} : vector<2x96xf32> to vector<2x32xf32>
    %173 = arith.addf %171, %172 : vector<2x32xf32>
    %174 = arith.negf %173 : vector<2x32xf32>
    %175 = math.exp %174 : vector<2x32xf32>
    %cst_32 = arith.constant 1.000000e+00 : f32
    %176 = vector.broadcast %cst_32 : f32 to vector<2x32xf32>
    %177 = arith.addf %176, %175 : vector<2x32xf32>
    %178 = arith.divf %176, %177 : vector<2x32xf32>
    %179 = vector.extract_strided_slice %159 {offsets = [0, 64], sizes = [2, 32], strides = [1, 1]} : vector<2x96xf32> to vector<2x32xf32>
    %180 = vector.extract_strided_slice %162 {offsets = [0, 64], sizes = [2, 32], strides = [1, 1]} : vector<2x96xf32> to vector<2x32xf32>
    %181 = arith.mulf %170, %180 : vector<2x32xf32>
    %182 = arith.addf %179, %181 : vector<2x32xf32>
    %183 = math.tanh %182 : vector<2x32xf32>
    %cst_33 = arith.constant 1.000000e+00 : f32
    %184 = vector.broadcast %cst_33 : f32 to vector<2x32xf32>
    %185 = arith.subf %184, %178 : vector<2x32xf32>
    %186 = arith.mulf %185, %183 : vector<2x32xf32>
    %187 = arith.mulf %178, %158 : vector<2x32xf32>
    %188 = arith.addf %186, %187 : vector<2x32xf32>
    %189 = vector.extract_strided_slice %7 {offsets = [12, 0], sizes = [2, 96], strides = [1, 1]} : vector<16x96xf32> to vector<2x96xf32>
    %cst_34 = arith.constant dense<0.000000e+00> : vector<2x96xf32>
    %190 = tpu.matmul %188, %2, %cst_34 {dimension_numbers = #tpu.dot_dimension_numbers<[1], [0], [0], [1], [0, 0, 1, 1], [], []>} : vector<2x32xf32>, vector<32x96xf32>, vector<2x96xf32> -> vector<2x96xf32>
    %191 = vector.broadcast %4 : vector<1x96xf32> to vector<2x96xf32>
    %192 = arith.addf %190, %191 : vector<2x96xf32>
    %193 = vector.extract_strided_slice %189 {offsets = [0, 0], sizes = [2, 32], strides = [1, 1]} : vector<2x96xf32> to vector<2x32xf32>
    %194 = vector.extract_strided_slice %192 {offsets = [0, 0], sizes = [2, 32], strides = [1, 1]} : vector<2x96xf32> to vector<2x32xf32>
    %195 = arith.addf %193, %194 : vector<2x32xf32>
    %196 = arith.negf %195 : vector<2x32xf32>
    %197 = math.exp %196 : vector<2x32xf32>
    %cst_35 = arith.constant 1.000000e+00 : f32
    %198 = vector.broadcast %cst_35 : f32 to vector<2x32xf32>
    %199 = arith.addf %198, %197 : vector<2x32xf32>
    %200 = arith.divf %198, %199 : vector<2x32xf32>
    %201 = vector.extract_strided_slice %189 {offsets = [0, 32], sizes = [2, 32], strides = [1, 1]} : vector<2x96xf32> to vector<2x32xf32>
    %202 = vector.extract_strided_slice %192 {offsets = [0, 32], sizes = [2, 32], strides = [1, 1]} : vector<2x96xf32> to vector<2x32xf32>
    %203 = arith.addf %201, %202 : vector<2x32xf32>
    %204 = arith.negf %203 : vector<2x32xf32>
    %205 = math.exp %204 : vector<2x32xf32>
    %cst_36 = arith.constant 1.000000e+00 : f32
    %206 = vector.broadcast %cst_36 : f32 to vector<2x32xf32>
    %207 = arith.addf %206, %205 : vector<2x32xf32>
    %208 = arith.divf %206, %207 : vector<2x32xf32>
    %209 = vector.extract_strided_slice %189 {offsets = [0, 64], sizes = [2, 32], strides = [1, 1]} : vector<2x96xf32> to vector<2x32xf32>
    %210 = vector.extract_strided_slice %192 {offsets = [0, 64], sizes = [2, 32], strides = [1, 1]} : vector<2x96xf32> to vector<2x32xf32>
    %211 = arith.mulf %200, %210 : vector<2x32xf32>
    %212 = arith.addf %209, %211 : vector<2x32xf32>
    %213 = math.tanh %212 : vector<2x32xf32>
    %cst_37 = arith.constant 1.000000e+00 : f32
    %214 = vector.broadcast %cst_37 : f32 to vector<2x32xf32>
    %215 = arith.subf %214, %208 : vector<2x32xf32>
    %216 = arith.mulf %215, %213 : vector<2x32xf32>
    %217 = arith.mulf %208, %188 : vector<2x32xf32>
    %218 = arith.addf %216, %217 : vector<2x32xf32>
    %219 = vector.extract_strided_slice %7 {offsets = [14, 0], sizes = [2, 96], strides = [1, 1]} : vector<16x96xf32> to vector<2x96xf32>
    %cst_38 = arith.constant dense<0.000000e+00> : vector<2x96xf32>
    %220 = tpu.matmul %218, %2, %cst_38 {dimension_numbers = #tpu.dot_dimension_numbers<[1], [0], [0], [1], [0, 0, 1, 1], [], []>} : vector<2x32xf32>, vector<32x96xf32>, vector<2x96xf32> -> vector<2x96xf32>
    %221 = vector.broadcast %4 : vector<1x96xf32> to vector<2x96xf32>
    %222 = arith.addf %220, %221 : vector<2x96xf32>
    %223 = vector.extract_strided_slice %219 {offsets = [0, 0], sizes = [2, 32], strides = [1, 1]} : vector<2x96xf32> to vector<2x32xf32>
    %224 = vector.extract_strided_slice %222 {offsets = [0, 0], sizes = [2, 32], strides = [1, 1]} : vector<2x96xf32> to vector<2x32xf32>
    %225 = arith.addf %223, %224 : vector<2x32xf32>
    %226 = arith.negf %225 : vector<2x32xf32>
    %227 = math.exp %226 : vector<2x32xf32>
    %cst_39 = arith.constant 1.000000e+00 : f32
    %228 = vector.broadcast %cst_39 : f32 to vector<2x32xf32>
    %229 = arith.addf %228, %227 : vector<2x32xf32>
    %230 = arith.divf %228, %229 : vector<2x32xf32>
    %231 = vector.extract_strided_slice %219 {offsets = [0, 32], sizes = [2, 32], strides = [1, 1]} : vector<2x96xf32> to vector<2x32xf32>
    %232 = vector.extract_strided_slice %222 {offsets = [0, 32], sizes = [2, 32], strides = [1, 1]} : vector<2x96xf32> to vector<2x32xf32>
    %233 = arith.addf %231, %232 : vector<2x32xf32>
    %234 = arith.negf %233 : vector<2x32xf32>
    %235 = math.exp %234 : vector<2x32xf32>
    %cst_40 = arith.constant 1.000000e+00 : f32
    %236 = vector.broadcast %cst_40 : f32 to vector<2x32xf32>
    %237 = arith.addf %236, %235 : vector<2x32xf32>
    %238 = arith.divf %236, %237 : vector<2x32xf32>
    %239 = vector.extract_strided_slice %219 {offsets = [0, 64], sizes = [2, 32], strides = [1, 1]} : vector<2x96xf32> to vector<2x32xf32>
    %240 = vector.extract_strided_slice %222 {offsets = [0, 64], sizes = [2, 32], strides = [1, 1]} : vector<2x96xf32> to vector<2x32xf32>
    %241 = arith.mulf %230, %240 : vector<2x32xf32>
    %242 = arith.addf %239, %241 : vector<2x32xf32>
    %243 = math.tanh %242 : vector<2x32xf32>
    %cst_41 = arith.constant 1.000000e+00 : f32
    %244 = vector.broadcast %cst_41 : f32 to vector<2x32xf32>
    %245 = arith.subf %244, %238 : vector<2x32xf32>
    %246 = arith.mulf %245, %243 : vector<2x32xf32>
    %247 = arith.mulf %238, %218 : vector<2x32xf32>
    %248 = arith.addf %246, %247 : vector<2x32xf32>
    %249 = tpu.concatenate %38, %68, %98, %128, %158, %188, %218, %248 in 0 : vector<2x32xf32>, vector<2x32xf32>, vector<2x32xf32>, vector<2x32xf32>, vector<2x32xf32>, vector<2x32xf32>, vector<2x32xf32>, vector<2x32xf32> -> vector<16x32xf32>
    %c0_42 = arith.constant 0 : index
    %c0_43 = arith.constant 0 : index
    %250 = vector.load %arg5[%c0_42, %c0_43] : memref<32x96xf32, #tpu.memory_space<vmem>>, vector<32x96xf32>
    %c0_44 = arith.constant 0 : index
    %c0_45 = arith.constant 0 : index
    %251 = vector.load %arg6[%c0_44, %c0_45] : memref<32x96xf32, #tpu.memory_space<vmem>>, vector<32x96xf32>
    %c0_46 = arith.constant 0 : index
    %c0_47 = arith.constant 0 : index
    %252 = vector.load %arg7[%c0_46, %c0_47] : memref<1x96xf32, #tpu.memory_space<vmem>>, vector<1x96xf32>
    %c0_48 = arith.constant 0 : index
    %c0_49 = arith.constant 0 : index
    %253 = vector.load %arg8[%c0_48, %c0_49] : memref<1x96xf32, #tpu.memory_space<vmem>>, vector<1x96xf32>
    %cst_50 = arith.constant dense<0.000000e+00> : vector<16x96xf32>
    %254 = tpu.matmul %249, %250, %cst_50 {dimension_numbers = #tpu.dot_dimension_numbers<[1], [0], [0], [1], [0, 0, 1, 1], [], []>} : vector<16x32xf32>, vector<32x96xf32>, vector<16x96xf32> -> vector<16x96xf32>
    %255 = vector.broadcast %252 : vector<1x96xf32> to vector<16x96xf32>
    %256 = arith.addf %254, %255 : vector<16x96xf32>
    %cst_51 = arith.constant 0.000000e+00 : f32
    %257 = vector.broadcast %cst_51 : f32 to vector<2x32xf32>
    %258 = vector.extract_strided_slice %256 {offsets = [0, 0], sizes = [2, 96], strides = [1, 1]} : vector<16x96xf32> to vector<2x96xf32>
    %cst_52 = arith.constant dense<0.000000e+00> : vector<2x96xf32>
    %259 = tpu.matmul %257, %251, %cst_52 {dimension_numbers = #tpu.dot_dimension_numbers<[1], [0], [0], [1], [0, 0, 1, 1], [], []>} : vector<2x32xf32>, vector<32x96xf32>, vector<2x96xf32> -> vector<2x96xf32>
    %260 = vector.broadcast %253 : vector<1x96xf32> to vector<2x96xf32>
    %261 = arith.addf %259, %260 : vector<2x96xf32>
    %262 = vector.extract_strided_slice %258 {offsets = [0, 0], sizes = [2, 32], strides = [1, 1]} : vector<2x96xf32> to vector<2x32xf32>
    %263 = vector.extract_strided_slice %261 {offsets = [0, 0], sizes = [2, 32], strides = [1, 1]} : vector<2x96xf32> to vector<2x32xf32>
    %264 = arith.addf %262, %263 : vector<2x32xf32>
    %265 = arith.negf %264 : vector<2x32xf32>
    %266 = math.exp %265 : vector<2x32xf32>
    %cst_53 = arith.constant 1.000000e+00 : f32
    %267 = vector.broadcast %cst_53 : f32 to vector<2x32xf32>
    %268 = arith.addf %267, %266 : vector<2x32xf32>
    %269 = arith.divf %267, %268 : vector<2x32xf32>
    %270 = vector.extract_strided_slice %258 {offsets = [0, 32], sizes = [2, 32], strides = [1, 1]} : vector<2x96xf32> to vector<2x32xf32>
    %271 = vector.extract_strided_slice %261 {offsets = [0, 32], sizes = [2, 32], strides = [1, 1]} : vector<2x96xf32> to vector<2x32xf32>
    %272 = arith.addf %270, %271 : vector<2x32xf32>
    %273 = arith.negf %272 : vector<2x32xf32>
    %274 = math.exp %273 : vector<2x32xf32>
    %cst_54 = arith.constant 1.000000e+00 : f32
    %275 = vector.broadcast %cst_54 : f32 to vector<2x32xf32>
    %276 = arith.addf %275, %274 : vector<2x32xf32>
    %277 = arith.divf %275, %276 : vector<2x32xf32>
    %278 = vector.extract_strided_slice %258 {offsets = [0, 64], sizes = [2, 32], strides = [1, 1]} : vector<2x96xf32> to vector<2x32xf32>
    %279 = vector.extract_strided_slice %261 {offsets = [0, 64], sizes = [2, 32], strides = [1, 1]} : vector<2x96xf32> to vector<2x32xf32>
    %280 = arith.mulf %269, %279 : vector<2x32xf32>
    %281 = arith.addf %278, %280 : vector<2x32xf32>
    %282 = math.tanh %281 : vector<2x32xf32>
    %cst_55 = arith.constant 1.000000e+00 : f32
    %283 = vector.broadcast %cst_55 : f32 to vector<2x32xf32>
    %284 = arith.subf %283, %277 : vector<2x32xf32>
    %285 = arith.mulf %284, %282 : vector<2x32xf32>
    %286 = arith.mulf %277, %257 : vector<2x32xf32>
    %287 = arith.addf %285, %286 : vector<2x32xf32>
    %288 = vector.extract_strided_slice %256 {offsets = [2, 0], sizes = [2, 96], strides = [1, 1]} : vector<16x96xf32> to vector<2x96xf32>
    %cst_56 = arith.constant dense<0.000000e+00> : vector<2x96xf32>
    %289 = tpu.matmul %287, %251, %cst_56 {dimension_numbers = #tpu.dot_dimension_numbers<[1], [0], [0], [1], [0, 0, 1, 1], [], []>} : vector<2x32xf32>, vector<32x96xf32>, vector<2x96xf32> -> vector<2x96xf32>
    %290 = vector.broadcast %253 : vector<1x96xf32> to vector<2x96xf32>
    %291 = arith.addf %289, %290 : vector<2x96xf32>
    %292 = vector.extract_strided_slice %288 {offsets = [0, 0], sizes = [2, 32], strides = [1, 1]} : vector<2x96xf32> to vector<2x32xf32>
    %293 = vector.extract_strided_slice %291 {offsets = [0, 0], sizes = [2, 32], strides = [1, 1]} : vector<2x96xf32> to vector<2x32xf32>
    %294 = arith.addf %292, %293 : vector<2x32xf32>
    %295 = arith.negf %294 : vector<2x32xf32>
    %296 = math.exp %295 : vector<2x32xf32>
    %cst_57 = arith.constant 1.000000e+00 : f32
    %297 = vector.broadcast %cst_57 : f32 to vector<2x32xf32>
    %298 = arith.addf %297, %296 : vector<2x32xf32>
    %299 = arith.divf %297, %298 : vector<2x32xf32>
    %300 = vector.extract_strided_slice %288 {offsets = [0, 32], sizes = [2, 32], strides = [1, 1]} : vector<2x96xf32> to vector<2x32xf32>
    %301 = vector.extract_strided_slice %291 {offsets = [0, 32], sizes = [2, 32], strides = [1, 1]} : vector<2x96xf32> to vector<2x32xf32>
    %302 = arith.addf %300, %301 : vector<2x32xf32>
    %303 = arith.negf %302 : vector<2x32xf32>
    %304 = math.exp %303 : vector<2x32xf32>
    %cst_58 = arith.constant 1.000000e+00 : f32
    %305 = vector.broadcast %cst_58 : f32 to vector<2x32xf32>
    %306 = arith.addf %305, %304 : vector<2x32xf32>
    %307 = arith.divf %305, %306 : vector<2x32xf32>
    %308 = vector.extract_strided_slice %288 {offsets = [0, 64], sizes = [2, 32], strides = [1, 1]} : vector<2x96xf32> to vector<2x32xf32>
    %309 = vector.extract_strided_slice %291 {offsets = [0, 64], sizes = [2, 32], strides = [1, 1]} : vector<2x96xf32> to vector<2x32xf32>
    %310 = arith.mulf %299, %309 : vector<2x32xf32>
    %311 = arith.addf %308, %310 : vector<2x32xf32>
    %312 = math.tanh %311 : vector<2x32xf32>
    %cst_59 = arith.constant 1.000000e+00 : f32
    %313 = vector.broadcast %cst_59 : f32 to vector<2x32xf32>
    %314 = arith.subf %313, %307 : vector<2x32xf32>
    %315 = arith.mulf %314, %312 : vector<2x32xf32>
    %316 = arith.mulf %307, %287 : vector<2x32xf32>
    %317 = arith.addf %315, %316 : vector<2x32xf32>
    %318 = vector.extract_strided_slice %256 {offsets = [4, 0], sizes = [2, 96], strides = [1, 1]} : vector<16x96xf32> to vector<2x96xf32>
    %cst_60 = arith.constant dense<0.000000e+00> : vector<2x96xf32>
    %319 = tpu.matmul %317, %251, %cst_60 {dimension_numbers = #tpu.dot_dimension_numbers<[1], [0], [0], [1], [0, 0, 1, 1], [], []>} : vector<2x32xf32>, vector<32x96xf32>, vector<2x96xf32> -> vector<2x96xf32>
    %320 = vector.broadcast %253 : vector<1x96xf32> to vector<2x96xf32>
    %321 = arith.addf %319, %320 : vector<2x96xf32>
    %322 = vector.extract_strided_slice %318 {offsets = [0, 0], sizes = [2, 32], strides = [1, 1]} : vector<2x96xf32> to vector<2x32xf32>
    %323 = vector.extract_strided_slice %321 {offsets = [0, 0], sizes = [2, 32], strides = [1, 1]} : vector<2x96xf32> to vector<2x32xf32>
    %324 = arith.addf %322, %323 : vector<2x32xf32>
    %325 = arith.negf %324 : vector<2x32xf32>
    %326 = math.exp %325 : vector<2x32xf32>
    %cst_61 = arith.constant 1.000000e+00 : f32
    %327 = vector.broadcast %cst_61 : f32 to vector<2x32xf32>
    %328 = arith.addf %327, %326 : vector<2x32xf32>
    %329 = arith.divf %327, %328 : vector<2x32xf32>
    %330 = vector.extract_strided_slice %318 {offsets = [0, 32], sizes = [2, 32], strides = [1, 1]} : vector<2x96xf32> to vector<2x32xf32>
    %331 = vector.extract_strided_slice %321 {offsets = [0, 32], sizes = [2, 32], strides = [1, 1]} : vector<2x96xf32> to vector<2x32xf32>
    %332 = arith.addf %330, %331 : vector<2x32xf32>
    %333 = arith.negf %332 : vector<2x32xf32>
    %334 = math.exp %333 : vector<2x32xf32>
    %cst_62 = arith.constant 1.000000e+00 : f32
    %335 = vector.broadcast %cst_62 : f32 to vector<2x32xf32>
    %336 = arith.addf %335, %334 : vector<2x32xf32>
    %337 = arith.divf %335, %336 : vector<2x32xf32>
    %338 = vector.extract_strided_slice %318 {offsets = [0, 64], sizes = [2, 32], strides = [1, 1]} : vector<2x96xf32> to vector<2x32xf32>
    %339 = vector.extract_strided_slice %321 {offsets = [0, 64], sizes = [2, 32], strides = [1, 1]} : vector<2x96xf32> to vector<2x32xf32>
    %340 = arith.mulf %329, %339 : vector<2x32xf32>
    %341 = arith.addf %338, %340 : vector<2x32xf32>
    %342 = math.tanh %341 : vector<2x32xf32>
    %cst_63 = arith.constant 1.000000e+00 : f32
    %343 = vector.broadcast %cst_63 : f32 to vector<2x32xf32>
    %344 = arith.subf %343, %337 : vector<2x32xf32>
    %345 = arith.mulf %344, %342 : vector<2x32xf32>
    %346 = arith.mulf %337, %317 : vector<2x32xf32>
    %347 = arith.addf %345, %346 : vector<2x32xf32>
    %348 = vector.extract_strided_slice %256 {offsets = [6, 0], sizes = [2, 96], strides = [1, 1]} : vector<16x96xf32> to vector<2x96xf32>
    %cst_64 = arith.constant dense<0.000000e+00> : vector<2x96xf32>
    %349 = tpu.matmul %347, %251, %cst_64 {dimension_numbers = #tpu.dot_dimension_numbers<[1], [0], [0], [1], [0, 0, 1, 1], [], []>} : vector<2x32xf32>, vector<32x96xf32>, vector<2x96xf32> -> vector<2x96xf32>
    %350 = vector.broadcast %253 : vector<1x96xf32> to vector<2x96xf32>
    %351 = arith.addf %349, %350 : vector<2x96xf32>
    %352 = vector.extract_strided_slice %348 {offsets = [0, 0], sizes = [2, 32], strides = [1, 1]} : vector<2x96xf32> to vector<2x32xf32>
    %353 = vector.extract_strided_slice %351 {offsets = [0, 0], sizes = [2, 32], strides = [1, 1]} : vector<2x96xf32> to vector<2x32xf32>
    %354 = arith.addf %352, %353 : vector<2x32xf32>
    %355 = arith.negf %354 : vector<2x32xf32>
    %356 = math.exp %355 : vector<2x32xf32>
    %cst_65 = arith.constant 1.000000e+00 : f32
    %357 = vector.broadcast %cst_65 : f32 to vector<2x32xf32>
    %358 = arith.addf %357, %356 : vector<2x32xf32>
    %359 = arith.divf %357, %358 : vector<2x32xf32>
    %360 = vector.extract_strided_slice %348 {offsets = [0, 32], sizes = [2, 32], strides = [1, 1]} : vector<2x96xf32> to vector<2x32xf32>
    %361 = vector.extract_strided_slice %351 {offsets = [0, 32], sizes = [2, 32], strides = [1, 1]} : vector<2x96xf32> to vector<2x32xf32>
    %362 = arith.addf %360, %361 : vector<2x32xf32>
    %363 = arith.negf %362 : vector<2x32xf32>
    %364 = math.exp %363 : vector<2x32xf32>
    %cst_66 = arith.constant 1.000000e+00 : f32
    %365 = vector.broadcast %cst_66 : f32 to vector<2x32xf32>
    %366 = arith.addf %365, %364 : vector<2x32xf32>
    %367 = arith.divf %365, %366 : vector<2x32xf32>
    %368 = vector.extract_strided_slice %348 {offsets = [0, 64], sizes = [2, 32], strides = [1, 1]} : vector<2x96xf32> to vector<2x32xf32>
    %369 = vector.extract_strided_slice %351 {offsets = [0, 64], sizes = [2, 32], strides = [1, 1]} : vector<2x96xf32> to vector<2x32xf32>
    %370 = arith.mulf %359, %369 : vector<2x32xf32>
    %371 = arith.addf %368, %370 : vector<2x32xf32>
    %372 = math.tanh %371 : vector<2x32xf32>
    %cst_67 = arith.constant 1.000000e+00 : f32
    %373 = vector.broadcast %cst_67 : f32 to vector<2x32xf32>
    %374 = arith.subf %373, %367 : vector<2x32xf32>
    %375 = arith.mulf %374, %372 : vector<2x32xf32>
    %376 = arith.mulf %367, %347 : vector<2x32xf32>
    %377 = arith.addf %375, %376 : vector<2x32xf32>
    %378 = vector.extract_strided_slice %256 {offsets = [8, 0], sizes = [2, 96], strides = [1, 1]} : vector<16x96xf32> to vector<2x96xf32>
    %cst_68 = arith.constant dense<0.000000e+00> : vector<2x96xf32>
    %379 = tpu.matmul %377, %251, %cst_68 {dimension_numbers = #tpu.dot_dimension_numbers<[1], [0], [0], [1], [0, 0, 1, 1], [], []>} : vector<2x32xf32>, vector<32x96xf32>, vector<2x96xf32> -> vector<2x96xf32>
    %380 = vector.broadcast %253 : vector<1x96xf32> to vector<2x96xf32>
    %381 = arith.addf %379, %380 : vector<2x96xf32>
    %382 = vector.extract_strided_slice %378 {offsets = [0, 0], sizes = [2, 32], strides = [1, 1]} : vector<2x96xf32> to vector<2x32xf32>
    %383 = vector.extract_strided_slice %381 {offsets = [0, 0], sizes = [2, 32], strides = [1, 1]} : vector<2x96xf32> to vector<2x32xf32>
    %384 = arith.addf %382, %383 : vector<2x32xf32>
    %385 = arith.negf %384 : vector<2x32xf32>
    %386 = math.exp %385 : vector<2x32xf32>
    %cst_69 = arith.constant 1.000000e+00 : f32
    %387 = vector.broadcast %cst_69 : f32 to vector<2x32xf32>
    %388 = arith.addf %387, %386 : vector<2x32xf32>
    %389 = arith.divf %387, %388 : vector<2x32xf32>
    %390 = vector.extract_strided_slice %378 {offsets = [0, 32], sizes = [2, 32], strides = [1, 1]} : vector<2x96xf32> to vector<2x32xf32>
    %391 = vector.extract_strided_slice %381 {offsets = [0, 32], sizes = [2, 32], strides = [1, 1]} : vector<2x96xf32> to vector<2x32xf32>
    %392 = arith.addf %390, %391 : vector<2x32xf32>
    %393 = arith.negf %392 : vector<2x32xf32>
    %394 = math.exp %393 : vector<2x32xf32>
    %cst_70 = arith.constant 1.000000e+00 : f32
    %395 = vector.broadcast %cst_70 : f32 to vector<2x32xf32>
    %396 = arith.addf %395, %394 : vector<2x32xf32>
    %397 = arith.divf %395, %396 : vector<2x32xf32>
    %398 = vector.extract_strided_slice %378 {offsets = [0, 64], sizes = [2, 32], strides = [1, 1]} : vector<2x96xf32> to vector<2x32xf32>
    %399 = vector.extract_strided_slice %381 {offsets = [0, 64], sizes = [2, 32], strides = [1, 1]} : vector<2x96xf32> to vector<2x32xf32>
    %400 = arith.mulf %389, %399 : vector<2x32xf32>
    %401 = arith.addf %398, %400 : vector<2x32xf32>
    %402 = math.tanh %401 : vector<2x32xf32>
    %cst_71 = arith.constant 1.000000e+00 : f32
    %403 = vector.broadcast %cst_71 : f32 to vector<2x32xf32>
    %404 = arith.subf %403, %397 : vector<2x32xf32>
    %405 = arith.mulf %404, %402 : vector<2x32xf32>
    %406 = arith.mulf %397, %377 : vector<2x32xf32>
    %407 = arith.addf %405, %406 : vector<2x32xf32>
    %408 = vector.extract_strided_slice %256 {offsets = [10, 0], sizes = [2, 96], strides = [1, 1]} : vector<16x96xf32> to vector<2x96xf32>
    %cst_72 = arith.constant dense<0.000000e+00> : vector<2x96xf32>
    %409 = tpu.matmul %407, %251, %cst_72 {dimension_numbers = #tpu.dot_dimension_numbers<[1], [0], [0], [1], [0, 0, 1, 1], [], []>} : vector<2x32xf32>, vector<32x96xf32>, vector<2x96xf32> -> vector<2x96xf32>
    %410 = vector.broadcast %253 : vector<1x96xf32> to vector<2x96xf32>
    %411 = arith.addf %409, %410 : vector<2x96xf32>
    %412 = vector.extract_strided_slice %408 {offsets = [0, 0], sizes = [2, 32], strides = [1, 1]} : vector<2x96xf32> to vector<2x32xf32>
    %413 = vector.extract_strided_slice %411 {offsets = [0, 0], sizes = [2, 32], strides = [1, 1]} : vector<2x96xf32> to vector<2x32xf32>
    %414 = arith.addf %412, %413 : vector<2x32xf32>
    %415 = arith.negf %414 : vector<2x32xf32>
    %416 = math.exp %415 : vector<2x32xf32>
    %cst_73 = arith.constant 1.000000e+00 : f32
    %417 = vector.broadcast %cst_73 : f32 to vector<2x32xf32>
    %418 = arith.addf %417, %416 : vector<2x32xf32>
    %419 = arith.divf %417, %418 : vector<2x32xf32>
    %420 = vector.extract_strided_slice %408 {offsets = [0, 32], sizes = [2, 32], strides = [1, 1]} : vector<2x96xf32> to vector<2x32xf32>
    %421 = vector.extract_strided_slice %411 {offsets = [0, 32], sizes = [2, 32], strides = [1, 1]} : vector<2x96xf32> to vector<2x32xf32>
    %422 = arith.addf %420, %421 : vector<2x32xf32>
    %423 = arith.negf %422 : vector<2x32xf32>
    %424 = math.exp %423 : vector<2x32xf32>
    %cst_74 = arith.constant 1.000000e+00 : f32
    %425 = vector.broadcast %cst_74 : f32 to vector<2x32xf32>
    %426 = arith.addf %425, %424 : vector<2x32xf32>
    %427 = arith.divf %425, %426 : vector<2x32xf32>
    %428 = vector.extract_strided_slice %408 {offsets = [0, 64], sizes = [2, 32], strides = [1, 1]} : vector<2x96xf32> to vector<2x32xf32>
    %429 = vector.extract_strided_slice %411 {offsets = [0, 64], sizes = [2, 32], strides = [1, 1]} : vector<2x96xf32> to vector<2x32xf32>
    %430 = arith.mulf %419, %429 : vector<2x32xf32>
    %431 = arith.addf %428, %430 : vector<2x32xf32>
    %432 = math.tanh %431 : vector<2x32xf32>
    %cst_75 = arith.constant 1.000000e+00 : f32
    %433 = vector.broadcast %cst_75 : f32 to vector<2x32xf32>
    %434 = arith.subf %433, %427 : vector<2x32xf32>
    %435 = arith.mulf %434, %432 : vector<2x32xf32>
    %436 = arith.mulf %427, %407 : vector<2x32xf32>
    %437 = arith.addf %435, %436 : vector<2x32xf32>
    %438 = vector.extract_strided_slice %256 {offsets = [12, 0], sizes = [2, 96], strides = [1, 1]} : vector<16x96xf32> to vector<2x96xf32>
    %cst_76 = arith.constant dense<0.000000e+00> : vector<2x96xf32>
    %439 = tpu.matmul %437, %251, %cst_76 {dimension_numbers = #tpu.dot_dimension_numbers<[1], [0], [0], [1], [0, 0, 1, 1], [], []>} : vector<2x32xf32>, vector<32x96xf32>, vector<2x96xf32> -> vector<2x96xf32>
    %440 = vector.broadcast %253 : vector<1x96xf32> to vector<2x96xf32>
    %441 = arith.addf %439, %440 : vector<2x96xf32>
    %442 = vector.extract_strided_slice %438 {offsets = [0, 0], sizes = [2, 32], strides = [1, 1]} : vector<2x96xf32> to vector<2x32xf32>
    %443 = vector.extract_strided_slice %441 {offsets = [0, 0], sizes = [2, 32], strides = [1, 1]} : vector<2x96xf32> to vector<2x32xf32>
    %444 = arith.addf %442, %443 : vector<2x32xf32>
    %445 = arith.negf %444 : vector<2x32xf32>
    %446 = math.exp %445 : vector<2x32xf32>
    %cst_77 = arith.constant 1.000000e+00 : f32
    %447 = vector.broadcast %cst_77 : f32 to vector<2x32xf32>
    %448 = arith.addf %447, %446 : vector<2x32xf32>
    %449 = arith.divf %447, %448 : vector<2x32xf32>
    %450 = vector.extract_strided_slice %438 {offsets = [0, 32], sizes = [2, 32], strides = [1, 1]} : vector<2x96xf32> to vector<2x32xf32>
    %451 = vector.extract_strided_slice %441 {offsets = [0, 32], sizes = [2, 32], strides = [1, 1]} : vector<2x96xf32> to vector<2x32xf32>
    %452 = arith.addf %450, %451 : vector<2x32xf32>
    %453 = arith.negf %452 : vector<2x32xf32>
    %454 = math.exp %453 : vector<2x32xf32>
    %cst_78 = arith.constant 1.000000e+00 : f32
    %455 = vector.broadcast %cst_78 : f32 to vector<2x32xf32>
    %456 = arith.addf %455, %454 : vector<2x32xf32>
    %457 = arith.divf %455, %456 : vector<2x32xf32>
    %458 = vector.extract_strided_slice %438 {offsets = [0, 64], sizes = [2, 32], strides = [1, 1]} : vector<2x96xf32> to vector<2x32xf32>
    %459 = vector.extract_strided_slice %441 {offsets = [0, 64], sizes = [2, 32], strides = [1, 1]} : vector<2x96xf32> to vector<2x32xf32>
    %460 = arith.mulf %449, %459 : vector<2x32xf32>
    %461 = arith.addf %458, %460 : vector<2x32xf32>
    %462 = math.tanh %461 : vector<2x32xf32>
    %cst_79 = arith.constant 1.000000e+00 : f32
    %463 = vector.broadcast %cst_79 : f32 to vector<2x32xf32>
    %464 = arith.subf %463, %457 : vector<2x32xf32>
    %465 = arith.mulf %464, %462 : vector<2x32xf32>
    %466 = arith.mulf %457, %437 : vector<2x32xf32>
    %467 = arith.addf %465, %466 : vector<2x32xf32>
    %468 = vector.extract_strided_slice %256 {offsets = [14, 0], sizes = [2, 96], strides = [1, 1]} : vector<16x96xf32> to vector<2x96xf32>
    %cst_80 = arith.constant dense<0.000000e+00> : vector<2x96xf32>
    %469 = tpu.matmul %467, %251, %cst_80 {dimension_numbers = #tpu.dot_dimension_numbers<[1], [0], [0], [1], [0, 0, 1, 1], [], []>} : vector<2x32xf32>, vector<32x96xf32>, vector<2x96xf32> -> vector<2x96xf32>
    %470 = vector.broadcast %253 : vector<1x96xf32> to vector<2x96xf32>
    %471 = arith.addf %469, %470 : vector<2x96xf32>
    %472 = vector.extract_strided_slice %468 {offsets = [0, 0], sizes = [2, 32], strides = [1, 1]} : vector<2x96xf32> to vector<2x32xf32>
    %473 = vector.extract_strided_slice %471 {offsets = [0, 0], sizes = [2, 32], strides = [1, 1]} : vector<2x96xf32> to vector<2x32xf32>
    %474 = arith.addf %472, %473 : vector<2x32xf32>
    %475 = arith.negf %474 : vector<2x32xf32>
    %476 = math.exp %475 : vector<2x32xf32>
    %cst_81 = arith.constant 1.000000e+00 : f32
    %477 = vector.broadcast %cst_81 : f32 to vector<2x32xf32>
    %478 = arith.addf %477, %476 : vector<2x32xf32>
    %479 = arith.divf %477, %478 : vector<2x32xf32>
    %480 = vector.extract_strided_slice %468 {offsets = [0, 32], sizes = [2, 32], strides = [1, 1]} : vector<2x96xf32> to vector<2x32xf32>
    %481 = vector.extract_strided_slice %471 {offsets = [0, 32], sizes = [2, 32], strides = [1, 1]} : vector<2x96xf32> to vector<2x32xf32>
    %482 = arith.addf %480, %481 : vector<2x32xf32>
    %483 = arith.negf %482 : vector<2x32xf32>
    %484 = math.exp %483 : vector<2x32xf32>
    %cst_82 = arith.constant 1.000000e+00 : f32
    %485 = vector.broadcast %cst_82 : f32 to vector<2x32xf32>
    %486 = arith.addf %485, %484 : vector<2x32xf32>
    %487 = arith.divf %485, %486 : vector<2x32xf32>
    %488 = vector.extract_strided_slice %468 {offsets = [0, 64], sizes = [2, 32], strides = [1, 1]} : vector<2x96xf32> to vector<2x32xf32>
    %489 = vector.extract_strided_slice %471 {offsets = [0, 64], sizes = [2, 32], strides = [1, 1]} : vector<2x96xf32> to vector<2x32xf32>
    %490 = arith.mulf %479, %489 : vector<2x32xf32>
    %491 = arith.addf %488, %490 : vector<2x32xf32>
    %492 = math.tanh %491 : vector<2x32xf32>
    %cst_83 = arith.constant 1.000000e+00 : f32
    %493 = vector.broadcast %cst_83 : f32 to vector<2x32xf32>
    %494 = arith.subf %493, %487 : vector<2x32xf32>
    %495 = arith.mulf %494, %492 : vector<2x32xf32>
    %496 = arith.mulf %487, %467 : vector<2x32xf32>
    %497 = arith.addf %495, %496 : vector<2x32xf32>
    %c0_84 = arith.constant 0 : index
    %c0_85 = arith.constant 0 : index
    %498 = vector.load %arg9[%c0_84, %c0_85] : memref<32x8xf32, #tpu.memory_space<vmem>>, vector<32x8xf32>
    %cst_86 = arith.constant dense<0.000000e+00> : vector<2x8xf32>
    %499 = tpu.matmul %497, %498, %cst_86 {dimension_numbers = #tpu.dot_dimension_numbers<[1], [0], [0], [1], [0, 0, 1, 1], [], []>} : vector<2x32xf32>, vector<32x8xf32>, vector<2x8xf32> -> vector<2x8xf32>
    %c0_87 = arith.constant 0 : index
    %c0_88 = arith.constant 0 : index
    %500 = vector.load %arg10[%c0_87, %c0_88] : memref<1x8xf32, #tpu.memory_space<vmem>>, vector<1x8xf32>
    %501 = vector.broadcast %500 : vector<1x8xf32> to vector<2x8xf32>
    %502 = arith.addf %499, %501 : vector<2x8xf32>
    %503 = tpu.iota {dimensions = array<i32: 1>} : vector<2x8xi32>
    %c4_i32 = arith.constant 4 : i32
    %504 = vector.broadcast %c4_i32 : i32 to vector<2x8xi32>
    %505 = arith.cmpi slt, %503, %504 : vector<2x8xi32>
    %cst_89 = arith.constant 0.000000e+00 : f32
    %506 = vector.broadcast %cst_89 : f32 to vector<2x8xf32>
    %507 = arith.maximumf %502, %506 : vector<2x8xf32>
    %508 = vector.broadcast %cst_89 : f32 to vector<2x8xf32>
    %509 = arith.subf %502, %508 : vector<2x8xf32>
    %510 = arith.cmpf one, %509, %509 : vector<2x8xf32>
    %511 = vector.broadcast %cst_89 : f32 to vector<2x8xf32>
    %512 = arith.addf %502, %511 : vector<2x8xf32>
    %513 = math.absf %509 : vector<2x8xf32>
    %cst_90 = arith.constant 0.000000e+00 : f32
    %514 = vector.broadcast %cst_90 : f32 to vector<2x8xf32>
    %515 = arith.subf %514, %513 : vector<2x8xf32>
    %516 = math.exp %515 : vector<2x8xf32>
    %517 = math.log1p %516 : vector<2x8xf32>
    %518 = arith.addf %507, %517 : vector<2x8xf32>
    %519 = arith.select %510, %512, %518 : vector<2x8xi1>, vector<2x8xf32>
    %520 = arith.select %505, %502, %519 : vector<2x8xi1>, vector<2x8xf32>
    %c0_91 = arith.constant 0 : index
    %c0_92 = arith.constant 0 : index
    %521 = vector.load %arg11[%c0_91, %c0_92] : memref<2x8xf32, #tpu.memory_space<vmem>>, vector<2x8xf32>
    tpu.vector_store %arg11[%c0_91, %c0_92], %520 {strides = array<i32>} : memref<2x8xf32, #tpu.memory_space<vmem>>, vector<2x8xf32>,
    return
  }
}

</mosaic_0001>

<llo_original>
// kernel: factor_encoder_forward.1
$region0: #{factor_encoder_forward.1}
  #allocation0 [shape = 'u32[]', space=smem, size = 0x4, offset = 0x4, fixed_abs, tag = 'smem constant byte address 0x4 - core index']
  #allocation1 [shape = 'u32[144,128]{1,0:T(1,128)}', space=vmem, size = 0x12000, scoped, tag = 'internal scratch']
  %s0 = inlined_call_operand.vmem [shape: f32[16,16], index: 0, kind: input, shape index: {}]
  %s1 = inlined_call_operand.hbm [shape: f32[16,96], index: 1, kind: input, shape index: {}]
  %s2 = inlined_call_operand.vmem [shape: f32[32,96], index: 2, kind: input, shape index: {}]
  %s3 = inlined_call_operand.vmem [shape: f32[1,96], index: 3, kind: input, shape index: {}]
  %s4 = inlined_call_operand.vmem [shape: f32[1,96], index: 4, kind: input, shape index: {}]
  %s5 = inlined_call_operand.hbm [shape: f32[32,96], index: 5, kind: input, shape index: {}]
  %s6 = inlined_call_operand.vmem [shape: f32[32,96], index: 6, kind: input, shape index: {}]
  %s7 = inlined_call_operand.hbm [shape: f32[1,96], index: 7, kind: input, shape index: {}]
  %s8 = inlined_call_operand.hbm [shape: f32[1,96], index: 8, kind: input, shape index: {}]
  %s9 = inlined_call_operand.vmem [shape: f32[32,8], index: 9, kind: input, shape index: {}]
  %s10 = inlined_call_operand.vmem [shape: f32[1,8], index: 10, kind: input, shape index: {}]
  %s11 = inlined_call_operand.vmem [shape: f32[2,8], index: 11, kind: output, shape index: {}]
  %s12 = sld [smem:[#allocation0]]
  $region70: #{factor_encoder_forward.1} parent=0
    _
  %s14 = ssub.s32 1, %s12
  %s15 = scalar_select 0, %s14, %s12
  $region1: #{factor_encoder_forward.1} parent=0
    #allocation2 [shape = 'u8[8192]{0}', space=vmem, size = 0x2000, scoped, tag = 'input window, operand 1, single buffered']
    #allocation3 [shape = 's32[1]{0}', space=sflag, size = 0x4, scoped, tag = 'scoped memory for factor_encoder_forward.1']
    #allocation4 [shape = 'u8[16384]{0}', space=vmem, size = 0x4000, scoped, tag = 'input window, operand 5, single buffered']
    #allocation5 [shape = 's32[1]{0}', space=sflag, size = 0x4, scoped, tag = 'scoped memory for factor_encoder_forward.1']
    #allocation6 [shape = 'u8[512]{0}', space=vmem, size = 0x400, scoped, tag = 'input window, operand 7, single buffered']
    #allocation7 [shape = 'u8[512]{0}', space=vmem, size = 0x400, scoped, tag = 'input window, operand 8, single buffered']
    #allocation8 [shape = 's32[1]{0}', space=sflag, size = 0x4, scoped, tag = 'scoped memory for factor_encoder_forward.1']
    %16 = vsyncpa [#allocation3], 0
    %17 = vsyncpa [#allocation5], 0
    %18 = vsyncpa [#allocation8], 0
    // Predicated region
    $region2: #{factor_encoder_forward.1} parent=1 // pred_check
      _
    $region3: #{factor_encoder_forward.1} parent=1 // pred_check_branch
      %20 = sbr.rel (0) target = $region5
    $region4: #{factor_encoder_forward.1} parent=1 // pred_region
      _
    $region5: #{factor_encoder_forward.1} parent=1 // pred_fallthru
      _
    // Predicated region
    $region6: #{factor_encoder_forward.1} parent=1 // pred_check
      _
    $region7: #{factor_encoder_forward.1} parent=1 // pred_check_branch
      %22 = sbr.rel (0) target = $region9
    $region8: #{factor_encoder_forward.1} parent=1 // pred_region
      %s24 = ssub.s32 256, 256
      %25 = vsyncadd [#allocation3], %s24
      %s26 = sshll.u32 [#allocation2], 4
      %s27 = int_to_ptr.vmem [resolvable:$true] %s26
      %32 = dma.hbm_to_vmem [thread:$0]  %s1, 256, %s27, [#allocation3], 128, 128, 8
    $region9: #{factor_encoder_forward.1} parent=1 // pred_fallthru
      _
    // Predicated region
    $region10: #{factor_encoder_forward.1} parent=1 // pred_check
      _
    $region11: #{factor_encoder_forward.1} parent=1 // pred_check_branch
      %34 = sbr.rel (0) target = $region13
    $region12: #{factor_encoder_forward.1} parent=1 // pred_region
      _
    $region13: #{factor_encoder_forward.1} parent=1 // pred_fallthru
      _
    // Predicated region
    $region14: #{factor_encoder_forward.1} parent=1 // pred_check
      _
    $region15: #{factor_encoder_forward.1} parent=1 // pred_check_branch
      %36 = sbr.rel (0) target = $region17
    $region16: #{factor_encoder_forward.1} parent=1 // pred_region
      _
    $region17: #{factor_encoder_forward.1} parent=1 // pred_fallthru
      _
    // Predicated region
    $region18: #{factor_encoder_forward.1} parent=1 // pred_check
      _
    $region19: #{factor_encoder_forward.1} parent=1 // pred_check_branch
      %38 = sbr.rel (0) target = $region21
    $region20: #{factor_encoder_forward.1} parent=1 // pred_region
      _
    $region21: #{factor_encoder_forward.1} parent=1 // pred_fallthru
      _
    // Predicated region
    $region22: #{factor_encoder_forward.1} parent=1 // pred_check
      _
    $region23: #{factor_encoder_forward.1} parent=1 // pred_check_branch
      %40 = sbr.rel (0) target = $region25
    $region24: #{factor_encoder_forward.1} parent=1 // pred_region
      %s42 = ssub.s32 512, 512
      %43 = vsyncadd [#allocation5], %s42
      %s44 = sshll.u32 [#allocation4], 4
      %s45 = int_to_ptr.vmem [resolvable:$true] %s44
      %50 = dma.hbm_to_vmem [thread:$0]  %s5, 512, %s45, [#allocation5], 128, 128, 8
    $region25: #{factor_encoder_forward.1} parent=1 // pred_fallthru
      _
    // Predicated region
    $region26: #{factor_encoder_forward.1} parent=1 // pred_check
      _
    $region27: #{factor_encoder_forward.1} parent=1 // pred_check_branch
      %52 = sbr.rel (0) target = $region29
    $region28: #{factor_encoder_forward.1} parent=1 // pred_region
      _
    $region29: #{factor_encoder_forward.1} parent=1 // pred_fallthru
      _
    // Predicated region
    $region30: #{factor_encoder_forward.1} parent=1 // pred_check
      _
    $region31: #{factor_encoder_forward.1} parent=1 // pred_check_branch
      %54 = sbr.rel (0) target = $region33
    $region32: #{factor_encoder_forward.1} parent=1 // pred_region
      %s56 = ssub.s32 16, 16
      %57 = vsyncadd [#allocation5], %s56
      %s59 = sshll.u32 [#allocation6], 4
      %s60 = int_to_ptr.vmem [resolvable:$true] %s59
      %62 = dma.hbm_to_vmem [thread:$0]  %s7, 16, %s60, [#allocation5]
    $region33: #{factor_encoder_forward.1} parent=1 // pred_fallthru
      _
    // Predicated region
    $region34: #{factor_encoder_forward.1} parent=1 // pred_check
      _
    $region35: #{factor_encoder_forward.1} parent=1 // pred_check_branch
      %64 = sbr.rel (0) target = $region37
    $region36: #{factor_encoder_forward.1} parent=1 // pred_region
      %s66 = ssub.s32 16, 16
      %67 = vsyncadd [#allocation8], %s66
      %s69 = sshll.u32 [#allocation7], 4
      %s70 = int_to_ptr.vmem [resolvable:$true] %s69
      %72 = dma.hbm_to_vmem [thread:$0]  %s8, 16, %s70, [#allocation8]
    $region37: #{factor_encoder_forward.1} parent=1 // pred_fallthru
      _
    // Predicated region
    $region38: #{factor_encoder_forward.1} parent=1 // pred_check
      _
    $region39: #{factor_encoder_forward.1} parent=1 // pred_check_branch
      %74 = sbr.rel (0) target = $region41
    $region40: #{factor_encoder_forward.1} parent=1 // pred_region
      _
    $region41: #{factor_encoder_forward.1} parent=1 // pred_fallthru
      _
    // Predicated region
    $region42: #{factor_encoder_forward.1} parent=1 // pred_check
      _
    $region43: #{factor_encoder_forward.1} parent=1 // pred_check_branch
      %76 = sbr.rel (0) target = $region45
    $region44: #{factor_encoder_forward.1} parent=1 // pred_region
      _
    $region45: #{factor_encoder_forward.1} parent=1 // pred_fallthru
      _
    // Predicated region
    $region46: #{factor_encoder_forward.1} parent=1 // pred_check
      _
    $region47: #{factor_encoder_forward.1} parent=1 // pred_check_branch
      %78 = sbr.rel (0) target = $region49
    $region48: #{factor_encoder_forward.1} parent=1 // pred_region
      %79 = dma.done [#allocation3], 256
    $region49: #{factor_encoder_forward.1} parent=1 // pred_fallthru
      _
    // Predicated region
    $region50: #{factor_encoder_forward.1} parent=1 // pred_check
      _
    $region51: #{factor_encoder_forward.1} parent=1 // pred_check_branch
      %81 = sbr.rel (0) target = $region53
    $region52: #{factor_encoder_forward.1} parent=1 // pred_region
      %82 = dma.done [#allocation5], 512
    $region53: #{factor_encoder_forward.1} parent=1 // pred_fallthru
      _
    // Predicated region
    $region54: #{factor_encoder_forward.1} parent=1 // pred_check
      _
    $region55: #{factor_encoder_forward.1} parent=1 // pred_check_branch
      %84 = sbr.rel (0) target = $region57
    $region56: #{factor_encoder_forward.1} parent=1 // pred_region
      %85 = dma.done [#allocation5], 16
    $region57: #{factor_encoder_forward.1} parent=1 // pred_fallthru
      _
    // Predicated region
    $region58: #{factor_encoder_forward.1} parent=1 // pred_check
      _
    $region59: #{factor_encoder_forward.1} parent=1 // pred_check_branch
      %87 = sbr.rel (0) target = $region61
    $region60: #{factor_encoder_forward.1} parent=1 // pred_region
      %88 = dma.done [#allocation8], 16
    $region61: #{factor_encoder_forward.1} parent=1 // pred_fallthru
      _
    %v89 = vld [vmem:[%s0] sm:$0xff]
    %v90 = vld [vmem:[%s0 + $0x8] sm:$0xff]
    %v91 = vld [vmem:[#allocation2] sm:$0xff]
    %v92 = vld [vmem:[#allocation2 + $0x8] sm:$0xff]
    %v93 = vld [vmem:[%s2] sm:$0xff]
    %v94 = vld [vmem:[%s2 + $0x8] sm:$0xff]
    %v95 = vld [vmem:[%s2 + $0x10] sm:$0xff]
    %v96 = vld [vmem:[%s2 + $0x18] sm:$0xff]
    %v97 = vld [vmem:[%s3] sm:$0x1]
    %v98 = vld [vmem:[%s4] sm:$0x1]
    %v100 = vlaneseq
    %v101 = vshrl.u32 %v100, 7
    %v102 = vsub.s32 0, %v101
    %v103 = vrot.slane %v97, %v102
    %vm105 = vcmask 130048
    %v107 = vsel %vm105, %v89, 0
    %v110 = vsel %vm105, %v90, 0
    %112 = vmatprep.subr.mxu0 0.0
    %113 = vmatpush1.msra.mxu0 %v91
    %114 = vmatprep.subr.mxu0 0.0
    %115 = vmatpush1.msra.mxu0 %v92
    %116 = vmatprep.subr.mxu0 0.0
    %117 = vmatpush1.msra.mxu0 0.0
    %118 = vmatprep.subr.mxu0 0.0
    %119 = vmatpush1.msra.mxu0 0.0
    %120 = vmatprep.subr.mxu0 0.0
    %121 = vmatpush1.msra.mxu0 0.0
    %122 = vmatprep.subr.mxu0 0.0
    %123 = vmatpush1.msra.mxu0 0.0
    %124 = vmatprep.subr.mxu0 0.0
    %125 = vmatpush1.msra.mxu0 0.0
    %126 = vmatprep.subr.mxu0 0.0
    %127 = vmatpush1.msra.mxu0 0.0
    %128 = vmatprep.subr.mxu0 0.0
    %129 = vmatpush1.msra.mxu0 0.0
    %130 = vmatprep.subr.mxu0 0.0
    %131 = vmatpush1.msra.mxu0 0.0
    %132 = vmatprep.subr.mxu0 0.0
    %133 = vmatpush1.msra.mxu0 0.0
    %134 = vmatprep.subr.mxu0 0.0
    %135 = vmatpush1.msra.mxu0 0.0
    %136 = vmatprep.subr.mxu0 0.0
    %137 = vmatpush1.msra.mxu0 0.0
    %138 = vmatprep.subr.mxu0 0.0
    %139 = vmatpush1.msra.mxu0 0.0
    %140 = vmatprep.subr.mxu0 0.0
    %141 = vmatpush1.msra.mxu0 0.0
    %142 = vmatprep.subr.mxu0 0.0
    %143 = vmatpush1.msra.mxu0 0.0
    %144 = vmatprep.subr.mxu0 0.0
    %145 = vmatpush1.msra.mxu0 0.0
    %146 = vmatprep.subr.mxu0 0.0
    %147 = vmatpush1.msra.mxu0 0.0
    %148 = vmatprep.subr.mxu0 0.0
    %149 = vmatpush1.msra.mxu0 0.0
    %150 = vmatprep.subr.mxu0 0.0
    %151 = vmatpush1.msra.mxu0 0.0
    %152 = vmatprep.subr.mxu0 0.0
    %153 = vmatpush1.msra.mxu0 0.0
    %154 = vmatprep.subr.mxu0 0.0
    %155 = vmatpush1.msra.mxu0 0.0
    %156 = vmatprep.subr.mxu0 0.0
    %157 = vmatpush1.msra.mxu0 0.0
    %158 = vmatprep.subr.mxu0 0.0
    %159 = vmatpush1.msra.mxu0 0.0
    %160 = vmatprep.subr.mxu0 0.0
    %161 = vmatpush1.msra.mxu0 0.0
    %162 = vmatprep.subr.mxu0 0.0
    %163 = vmatpush1.msra.mxu0 0.0
    %164 = vmatprep.subr.mxu0 0.0
    %165 = vmatpush1.msra.mxu0 0.0
    %166 = vmatprep.subr.mxu0 0.0
    %167 = vmatpush1.msra.mxu0 0.0
    %168 = vmatprep.subr.mxu0 0.0
    %169 = vmatpush1.msra.mxu0 0.0
    %170 = vmatprep.subr.mxu0 0.0
    %171 = vmatpush1.msra.mxu0 0.0
    %172 = vmatprep.subr.mxu0 0.0
    %173 = vmatpush1.msra.mxu0 0.0
    %174 = vmatprep.subr.mxu0 0.0
    %175 = vmatpush1.msra.mxu0 0.0
    %176 = vmatprep.mubr.f32.mxu0 0.0
    %177 = vmatmul.mubr.f32.gmra.mrb[0].mxu0 %v107
    %v178 = vpop.f32.mrb[0].mxu0
    %v179 = vadd.f32 %v103, %v178
    %v180 = vpop.f32.mrb[0].mxu0
    %181 = vmatprep.mubr.f32.mxu0 0.0
    %182 = vmatmul.mubr.f32.gmra.mrb[0].mxu0 %v110
    %v183 = vpop.f32.mrb[0].mxu0
    %v184 = vadd.f32 %v103, %v183
    %v185 = vpop.f32.mrb[0].mxu0
    %186 = vdwg.mxu0
    %v188 = vlaneseq
    %v189 = vshrl.u32 %v188, 7
    %v190 = vsub.s32 0, %v189
    %v191 = vrot.slane %v98, %v190
    %vm193 = vcmask 261120
    %v195 = vsel %vm193, 0.0, 0
    %197 = vmatprep.subr.mxu0 0.0
    %198 = vmatpush1.msra.mxu0 %v93
    %199 = vmatprep.subr.mxu0 0.0
    %200 = vmatpush1.msra.mxu0 %v94
    %201 = vmatprep.subr.mxu0 0.0
    %202 = vmatpush1.msra.mxu0 %v95
    %203 = vmatprep.subr.mxu0 0.0
    %204 = vmatpush1.msra.mxu0 %v96
    %205 = vmatprep.subr.mxu0 0.0
    %206 = vmatpush1.msra.mxu0 0.0
    %207 = vmatprep.subr.mxu0 0.0
    %208 = vmatpush1.msra.mxu0 0.0
    %209 = vmatprep.subr.mxu0 0.0
    %210 = vmatpush1.msra.mxu0 0.0
    %211 = vmatprep.subr.mxu0 0.0
    %212 = vmatpush1.msra.mxu0 0.0
    %213 = vmatprep.subr.mxu0 0.0
    %214 = vmatpush1.msra.mxu0 0.0
    %215 = vmatprep.subr.mxu0 0.0
    %216 = vmatpush1.msra.mxu0 0.0
    %217 = vmatprep.subr.mxu0 0.0
    %218 = vmatpush1.msra.mxu0 0.0
    %219 = vmatprep.subr.mxu0 0.0
    %220 = vmatpush1.msra.mxu0 0.0
    %221 = vmatprep.subr.mxu0 0.0
    %222 = vmatpush1.msra.mxu0 0.0
    %223 = vmatprep.subr.mxu0 0.0
    %224 = vmatpush1.msra.mxu0 0.0
    %225 = vmatprep.subr.mxu0 0.0
    %226 = vmatpush1.msra.mxu0 0.0
    %227 = vmatprep.subr.mxu0 0.0
    %228 = vmatpush1.msra.mxu0 0.0
    %229 = vmatprep.subr.mxu0 0.0
    %230 = vmatpush1.msra.mxu0 0.0
    %231 = vmatprep.subr.mxu0 0.0
    %232 = vmatpush1.msra.mxu0 0.0
    %233 = vmatprep.subr.mxu0 0.0
    %234 = vmatpush1.msra.mxu0 0.0
    %235 = vmatprep.subr.mxu0 0.0
    %236 = vmatpush1.msra.mxu0 0.0
    %237 = vmatprep.subr.mxu0 0.0
    %238 = vmatpush1.msra.mxu0 0.0
    %239 = vmatprep.subr.mxu0 0.0
    %240 = vmatpush1.msra.mxu0 0.0
    %241 = vmatprep.subr.mxu0 0.0
    %242 = vmatpush1.msra.mxu0 0.0
    %243 = vmatprep.subr.mxu0 0.0
    %244 = vmatpush1.msra.mxu0 0.0
    %245 = vmatprep.subr.mxu0 0.0
    %246 = vmatpush1.msra.mxu0 0.0
    %247 = vmatprep.subr.mxu0 0.0
    %248 = vmatpush1.msra.mxu0 0.0
    %249 = vmatprep.subr.mxu0 0.0
    %250 = vmatpush1.msra.mxu0 0.0
    %251 = vmatprep.subr.mxu0 0.0
    %252 = vmatpush1.msra.mxu0 0.0
    %253 = vmatprep.subr.mxu0 0.0
    %254 = vmatpush1.msra.mxu0 0.0
    %255 = vmatprep.subr.mxu0 0.0
    %256 = vmatpush1.msra.mxu0 0.0
    %257 = vmatprep.subr.mxu0 0.0
    %258 = vmatpush1.msra.mxu0 0.0
    %259 = vmatprep.subr.mxu0 0.0
    %260 = vmatpush1.msra.mxu0 0.0
    %261 = vmatprep.mubr.f32.mxu0 0.0
    %262 = vmatmul.mubr.f32.gmra.mrb[0].mxu0 %v195
    %v263 = vpop.f32.mrb[0].mxu0
    %v264 = vadd.f32 %v191, %v263
    %v265 = vpop.f32.mrb[0].mxu0
    %266 = vdwg.mxu0
    %v267 = vadd.f32 %v179, %v264
    %v268 = vxor.u32 %v267, 2147483648
    %v269 = vmul.f32 %v268, 1.442695
    %v270 = vpow.pop %v269
    %v271 = vadd.f32 %v270, 1.0
    %v272 = vrcp.pop %v271
    %v273 = vmul.f32 1.0, %v272
    %275 = vrot.lane.b32.xlu0 %v264, 64
    %v276 = vpop.permute.xlu0 %275
    %v278 = vmul.f32 %v273, %v276
    %280 = vrot.lane.b32.xlu0 %v278, 64
    %v281 = vpop.permute.xlu0 %280
    %v283 = vadd.f32 %v179, %v281
    %v284 = vtanh.pop %v283
    %v285 = vsub.f32 1.0, %v273
    %287 = vrot.lane.b32.xlu0 %v284, 96
    %v288 = vpop.permute.xlu0 %287
    %v290 = vmul.f32 %v285, %v288
    %v291 = vmul.f32 %v273, 0.0
    %v292 = vadd.f32 %v290, %v291
    %294 = vrot.lane.b32.xlu0 %v292, 96
    %v295 = vpop.permute.xlu0 %294
    %v296 = vsel %vm193, %v295, 0
    %298 = vmatprep.subr.mxu0 0.0
    %299 = vmatpush1.msra.mxu0 %v93
    %300 = vmatprep.subr.mxu0 0.0
    %301 = vmatpush1.msra.mxu0 %v94
    %302 = vmatprep.subr.mxu0 0.0
    %303 = vmatpush1.msra.mxu0 %v95
    %304 = vmatprep.subr.mxu0 0.0
    %305 = vmatpush1.msra.mxu0 %v96
    %306 = vmatprep.subr.mxu0 0.0
    %307 = vmatpush1.msra.mxu0 0.0
    %308 = vmatprep.subr.mxu0 0.0
    %309 = vmatpush1.msra.mxu0 0.0
    %310 = vmatprep.subr.mxu0 0.0
    %311 = vmatpush1.msra.mxu0 0.0
    %312 = vmatprep.subr.mxu0 0.0
    %313 = vmatpush1.msra.mxu0 0.0
    %314 = vmatprep.subr.mxu0 0.0
    %315 = vmatpush1.msra.mxu0 0.0
    %316 = vmatprep.subr.mxu0 0.0
    %317 = vmatpush1.msra.mxu0 0.0
    %318 = vmatprep.subr.mxu0 0.0
    %319 = vmatpush1.msra.mxu0 0.0
    %320 = vmatprep.subr.mxu0 0.0
    %321 = vmatpush1.msra.mxu0 0.0
    %322 = vmatprep.subr.mxu0 0.0
    %323 = vmatpush1.msra.mxu0 0.0
    %324 = vmatprep.subr.mxu0 0.0
    %325 = vmatpush1.msra.mxu0 0.0
    %326 = vmatprep.subr.mxu0 0.0
    %327 = vmatpush1.msra.mxu0 0.0
    %328 = vmatprep.subr.mxu0 0.0
    %329 = vmatpush1.msra.mxu0 0.0
    %330 = vmatprep.subr.mxu0 0.0
    %331 = vmatpush1.msra.mxu0 0.0
    %332 = vmatprep.subr.mxu0 0.0
    %333 = vmatpush1.msra.mxu0 0.0
    %334 = vmatprep.subr.mxu0 0.0
    %335 = vmatpush1.msra.mxu0 0.0
    %336 = vmatprep.subr.mxu0 0.0
    %337 = vmatpush1.msra.mxu0 0.0
    %338 = vmatprep.subr.mxu0 0.0
    %339 = vmatpush1.msra.mxu0 0.0
    %340 = vmatprep.subr.mxu0 0.0
    %341 = vmatpush1.msra.mxu0 0.0
    %342 = vmatprep.subr.mxu0 0.0
    %343 = vmatpush1.msra.mxu0 0.0
    %344 = vmatprep.subr.mxu0 0.0
    %345 = vmatpush1.msra.mxu0 0.0
    %346 = vmatprep.subr.mxu0 0.0
    %347 = vmatpush1.msra.mxu0 0.0
    %348 = vmatprep.subr.mxu0 0.0
    %349 = vmatpush1.msra.mxu0 0.0
    %350 = vmatprep.subr.mxu0 0.0
    %351 = vmatpush1.msra.mxu0 0.0
    %352 = vmatprep.subr.mxu0 0.0
    %353 = vmatpush1.msra.mxu0 0.0
    %354 = vmatprep.subr.mxu0 0.0
    %355 = vmatpush1.msra.mxu0 0.0
    %356 = vmatprep.subr.mxu0 0.0
    %357 = vmatpush1.msra.mxu0 0.0
    %358 = vmatprep.subr.mxu0 0.0
    %359 = vmatpush1.msra.mxu0 0.0
    %360 = vmatprep.subr.mxu0 0.0
    %361 = vmatpush1.msra.mxu0 0.0
    %362 = vmatprep.mubr.f32.mxu0 0.0
    %363 = vmatmul.mubr.f32.gmra.mrb[0].mxu0 %v296
    %v364 = vpop.f32.mrb[0].mxu0
    %v365 = vadd.f32 %v191, %v364
    %v366 = vpop.f32.mrb[0].mxu0
    %367 = vdwg.mxu0
    %v369 = vrot.slane %v365, 6
    %v371 = vadd.f32 %v179, %v369
    %v372 = vxor.u32 %v371, 2147483648
    %v373 = vmul.f32 %v372, 1.442695
    %v374 = vpow.pop %v373
    %v375 = vadd.f32 %v374, 1.0
    %v376 = vrcp.pop %v375
    %v377 = vmul.f32 1.0, %v376
    %378 = vrot.lane.b32.xlu0 %v369, 64
    %v379 = vpop.permute.xlu0 %378
    %v381 = vmul.f32 %v377, %v379
    %383 = vrot.lane.b32.xlu0 %v381, 64
    %v384 = vpop.permute.xlu0 %383
    %v386 = vadd.f32 %v179, %v384
    %v387 = vtanh.pop %v386
    %v388 = vsub.f32 1.0, %v377
    %390 = vrot.lane.b32.xlu0 %v387, 96
    %v391 = vpop.permute.xlu0 %390
    %v393 = vmul.f32 %v388, %v391
    %v394 = vrot.slane %v292, 6
    %v396 = vmul.f32 %v377, %v394
    %v397 = vadd.f32 %v393, %v396
    %v399 = vrot.slane %v397, 2
    %400 = vrot.lane.b32.xlu0 %v399, 96
    %v401 = vpop.permute.xlu0 %400
    %v402 = vsel %vm193, %v401, 0
    %404 = vmatprep.subr.mxu0 0.0
    %405 = vmatpush1.msra.mxu0 %v93
    %406 = vmatprep.subr.mxu0 0.0
    %407 = vmatpush1.msra.mxu0 %v94
    %408 = vmatprep.subr.mxu0 0.0
    %409 = vmatpush1.msra.mxu0 %v95
    %410 = vmatprep.subr.mxu0 0.0
    %411 = vmatpush1.msra.mxu0 %v96
    %412 = vmatprep.subr.mxu0 0.0
    %413 = vmatpush1.msra.mxu0 0.0
    %414 = vmatprep.subr.mxu0 0.0
    %415 = vmatpush1.msra.mxu0 0.0
    %416 = vmatprep.subr.mxu0 0.0
    %417 = vmatpush1.msra.mxu0 0.0
    %418 = vmatprep.subr.mxu0 0.0
    %419 = vmatpush1.msra.mxu0 0.0
    %420 = vmatprep.subr.mxu0 0.0
    %421 = vmatpush1.msra.mxu0 0.0
    %422 = vmatprep.subr.mxu0 0.0
    %423 = vmatpush1.msra.mxu0 0.0
    %424 = vmatprep.subr.mxu0 0.0
    %425 = vmatpush1.msra.mxu0 0.0
    %426 = vmatprep.subr.mxu0 0.0
    %427 = vmatpush1.msra.mxu0 0.0
    %428 = vmatprep.subr.mxu0 0.0
    %429 = vmatpush1.msra.mxu0 0.0
    %430 = vmatprep.subr.mxu0 0.0
    %431 = vmatpush1.msra.mxu0 0.0
    %432 = vmatprep.subr.mxu0 0.0
    %433 = vmatpush1.msra.mxu0 0.0
    %434 = vmatprep.subr.mxu0 0.0
    %435 = vmatpush1.msra.mxu0 0.0
    %436 = vmatprep.subr.mxu0 0.0
    %437 = vmatpush1.msra.mxu0 0.0
    %438 = vmatprep.subr.mxu0 0.0
    %439 = vmatpush1.msra.mxu0 0.0
    %440 = vmatprep.subr.mxu0 0.0
    %441 = vmatpush1.msra.mxu0 0.0
    %442 = vmatprep.subr.mxu0 0.0
    %443 = vmatpush1.msra.mxu0 0.0
    %444 = vmatprep.subr.mxu0 0.0
    %445 = vmatpush1.msra.mxu0 0.0
    %446 = vmatprep.subr.mxu0 0.0
    %447 = vmatpush1.msra.mxu0 0.0
    %448 = vmatprep.subr.mxu0 0.0
    %449 = vmatpush1.msra.mxu0 0.0
    %450 = vmatprep.subr.mxu0 0.0
    %451 = vmatpush1.msra.mxu0 0.0
    %452 = vmatprep.subr.mxu0 0.0
    %453 = vmatpush1.msra.mxu0 0.0
    %454 = vmatprep.subr.mxu0 0.0
    %455 = vmatpush1.msra.mxu0 0.0
    %456 = vmatprep.subr.mxu0 0.0
    %457 = vmatpush1.msra.mxu0 0.0
    %458 = vmatprep.subr.mxu0 0.0
    %459 = vmatpush1.msra.mxu0 0.0
    %460 = vmatprep.subr.mxu0 0.0
    %461 = vmatpush1.msra.mxu0 0.0
    %462 = vmatprep.subr.mxu0 0.0
    %463 = vmatpush1.msra.mxu0 0.0
    %464 = vmatprep.subr.mxu0 0.0
    %465 = vmatpush1.msra.mxu0 0.0
    %466 = vmatprep.subr.mxu0 0.0
    %467 = vmatpush1.msra.mxu0 0.0
    %468 = vmatprep.mubr.f32.mxu0 0.0
    %469 = vmatmul.mubr.f32.gmra.mrb[0].mxu0 %v402
    %v470 = vpop.f32.mrb[0].mxu0
    %v471 = vadd.f32 %v191, %v470
    %v472 = vpop.f32.mrb[0].mxu0
    %473 = vdwg.mxu0
    %v475 = vrot.slane %v471, 4
    %v477 = vadd.f32 %v179, %v475
    %v478 = vxor.u32 %v477, 2147483648
    %v479 = vmul.f32 %v478, 1.442695
    %v480 = vpow.pop %v479
    %v481 = vadd.f32 %v480, 1.0
    %v482 = vrcp.pop %v481
    %v483 = vmul.f32 1.0, %v482
    %484 = vrot.lane.b32.xlu0 %v475, 64
    %v485 = vpop.permute.xlu0 %484
    %v487 = vmul.f32 %v483, %v485
    %489 = vrot.lane.b32.xlu0 %v487, 64
    %v490 = vpop.permute.xlu0 %489
    %v492 = vadd.f32 %v179, %v490
    %v493 = vtanh.pop %v492
    %v494 = vsub.f32 1.0, %v483
    %496 = vrot.lane.b32.xlu0 %v493, 96
    %v497 = vpop.permute.xlu0 %496
    %v499 = vmul.f32 %v494, %v497
    %v500 = vrot.slane %v397, 6
    %v502 = vmul.f32 %v483, %v500
    %v503 = vadd.f32 %v499, %v502
    %v505 = vrot.slane %v503, 4
    %506 = vrot.lane.b32.xlu0 %v505, 96
    %v507 = vpop.permute.xlu0 %506
    %v508 = vsel %vm193, %v507, 0
    %510 = vmatprep.subr.mxu0 0.0
    %511 = vmatpush1.msra.mxu0 %v93
    %512 = vmatprep.subr.mxu0 0.0
    %513 = vmatpush1.msra.mxu0 %v94
    %514 = vmatprep.subr.mxu0 0.0
    %515 = vmatpush1.msra.mxu0 %v95
    %516 = vmatprep.subr.mxu0 0.0
    %517 = vmatpush1.msra.mxu0 %v96
    %518 = vmatprep.subr.mxu0 0.0
    %519 = vmatpush1.msra.mxu0 0.0
    %520 = vmatprep.subr.mxu0 0.0
    %521 = vmatpush1.msra.mxu0 0.0
    %522 = vmatprep.subr.mxu0 0.0
    %523 = vmatpush1.msra.mxu0 0.0
    %524 = vmatprep.subr.mxu0 0.0
    %525 = vmatpush1.msra.mxu0 0.0
    %526 = vmatprep.subr.mxu0 0.0
    %527 = vmatpush1.msra.mxu0 0.0
    %528 = vmatprep.subr.mxu0 0.0
    %529 = vmatpush1.msra.mxu0 0.0
    %530 = vmatprep.subr.mxu0 0.0
    %531 = vmatpush1.msra.mxu0 0.0
    %532 = vmatprep.subr.mxu0 0.0
    %533 = vmatpush1.msra.mxu0 0.0
    %534 = vmatprep.subr.mxu0 0.0
    %535 = vmatpush1.msra.mxu0 0.0
    %536 = vmatprep.subr.mxu0 0.0
    %537 = vmatpush1.msra.mxu0 0.0
    %538 = vmatprep.subr.mxu0 0.0
    %539 = vmatpush1.msra.mxu0 0.0
    %540 = vmatprep.subr.mxu0 0.0
    %541 = vmatpush1.msra.mxu0 0.0
    %542 = vmatprep.subr.mxu0 0.0
    %543 = vmatpush1.msra.mxu0 0.0
    %544 = vmatprep.subr.mxu0 0.0
    %545 = vmatpush1.msra.mxu0 0.0
    %546 = vmatprep.subr.mxu0 0.0
    %547 = vmatpush1.msra.mxu0 0.0
    %548 = vmatprep.subr.mxu0 0.0
    %549 = vmatpush1.msra.mxu0 0.0
    %550 = vmatprep.subr.mxu0 0.0
    %551 = vmatpush1.msra.mxu0 0.0
    %552 = vmatprep.subr.mxu0 0.0
    %553 = vmatpush1.msra.mxu0 0.0
    %554 = vmatprep.subr.mxu0 0.0
    %555 = vmatpush1.msra.mxu0 0.0
    %556 = vmatprep.subr.mxu0 0.0
    %557 = vmatpush1.msra.mxu0 0.0
    %558 = vmatprep.subr.mxu0 0.0
    %559 = vmatpush1.msra.mxu0 0.0
    %560 = vmatprep.subr.mxu0 0.0
    %561 = vmatpush1.msra.mxu0 0.0
    %562 = vmatprep.subr.mxu0 0.0
    %563 = vmatpush1.msra.mxu0 0.0
    %564 = vmatprep.subr.mxu0 0.0
    %565 = vmatpush1.msra.mxu0 0.0
    %566 = vmatprep.subr.mxu0 0.0
    %567 = vmatpush1.msra.mxu0 0.0
    %568 = vmatprep.subr.mxu0 0.0
    %569 = vmatpush1.msra.mxu0 0.0
    %570 = vmatprep.subr.mxu0 0.0
    %571 = vmatpush1.msra.mxu0 0.0
    %572 = vmatprep.subr.mxu0 0.0
    %573 = vmatpush1.msra.mxu0 0.0
    %574 = vmatprep.mubr.f32.mxu0 0.0
    %575 = vmatmul.mubr.f32.gmra.mrb[0].mxu0 %v508
    %v576 = vpop.f32.mrb[0].mxu0
    %v577 = vadd.f32 %v191, %v576
    %v578 = vpop.f32.mrb[0].mxu0
    %579 = vdwg.mxu0
    %v581 = vrot.slane %v577, 2
    %v583 = vadd.f32 %v179, %v581
    %v584 = vxor.u32 %v583, 2147483648
    %v585 = vmul.f32 %v584, 1.442695
    %v586 = vpow.pop %v585
    %v587 = vadd.f32 %v586, 1.0
    %v588 = vrcp.pop %v587
    %v589 = vmul.f32 1.0, %v588
    %590 = vrot.lane.b32.xlu0 %v581, 64
    %v591 = vpop.permute.xlu0 %590
    %v593 = vmul.f32 %v589, %v591
    %595 = vrot.lane.b32.xlu0 %v593, 64
    %v596 = vpop.permute.xlu0 %595
    %v598 = vadd.f32 %v179, %v596
    %v599 = vtanh.pop %v598
    %v600 = vsub.f32 1.0, %v589
    %602 = vrot.lane.b32.xlu0 %v599, 96
    %v603 = vpop.permute.xlu0 %602
    %v605 = vmul.f32 %v600, %v603
    %v606 = vrot.slane %v503, 6
    %v608 = vmul.f32 %v589, %v606
    %v609 = vadd.f32 %v605, %v608
    %v611 = vrot.slane %v609, 6
    %612 = vrot.lane.b32.xlu0 %v611, 96
    %v613 = vpop.permute.xlu0 %612
    %v614 = vsel %vm193, %v613, 0
    %616 = vmatprep.subr.mxu0 0.0
    %617 = vmatpush1.msra.mxu0 %v93
    %618 = vmatprep.subr.mxu0 0.0
    %619 = vmatpush1.msra.mxu0 %v94
    %620 = vmatprep.subr.mxu0 0.0
    %621 = vmatpush1.msra.mxu0 %v95
    %622 = vmatprep.subr.mxu0 0.0
    %623 = vmatpush1.msra.mxu0 %v96
    %624 = vmatprep.subr.mxu0 0.0
    %625 = vmatpush1.msra.mxu0 0.0
    %626 = vmatprep.subr.mxu0 0.0
    %627 = vmatpush1.msra.mxu0 0.0
    %628 = vmatprep.subr.mxu0 0.0
    %629 = vmatpush1.msra.mxu0 0.0
    %630 = vmatprep.subr.mxu0 0.0
    %631 = vmatpush1.msra.mxu0 0.0
    %632 = vmatprep.subr.mxu0 0.0
    %633 = vmatpush1.msra.mxu0 0.0
    %634 = vmatprep.subr.mxu0 0.0
    %635 = vmatpush1.msra.mxu0 0.0
    %636 = vmatprep.subr.mxu0 0.0
    %637 = vmatpush1.msra.mxu0 0.0
    %638 = vmatprep.subr.mxu0 0.0
    %639 = vmatpush1.msra.mxu0 0.0
    %640 = vmatprep.subr.mxu0 0.0
    %641 = vmatpush1.msra.mxu0 0.0
    %642 = vmatprep.subr.mxu0 0.0
    %643 = vmatpush1.msra.mxu0 0.0
    %644 = vmatprep.subr.mxu0 0.0
    %645 = vmatpush1.msra.mxu0 0.0
    %646 = vmatprep.subr.mxu0 0.0
    %647 = vmatpush1.msra.mxu0 0.0
    %648 = vmatprep.subr.mxu0 0.0
    %649 = vmatpush1.msra.mxu0 0.0
    %650 = vmatprep.subr.mxu0 0.0
    %651 = vmatpush1.msra.mxu0 0.0
    %652 = vmatprep.subr.mxu0 0.0
    %653 = vmatpush1.msra.mxu0 0.0
    %654 = vmatprep.subr.mxu0 0.0
    %655 = vmatpush1.msra.mxu0 0.0
    %656 = vmatprep.subr.mxu0 0.0
    %657 = vmatpush1.msra.mxu0 0.0
    %658 = vmatprep.subr.mxu0 0.0
    %659 = vmatpush1.msra.mxu0 0.0
    %660 = vmatprep.subr.mxu0 0.0
    %661 = vmatpush1.msra.mxu0 0.0
    %662 = vmatprep.subr.mxu0 0.0
    %663 = vmatpush1.msra.mxu0 0.0
    %664 = vmatprep.subr.mxu0 0.0
    %665 = vmatpush1.msra.mxu0 0.0
    %666 = vmatprep.subr.mxu0 0.0
    %667 = vmatpush1.msra.mxu0 0.0
    %668 = vmatprep.subr.mxu0 0.0
    %669 = vmatpush1.msra.mxu0 0.0
    %670 = vmatprep.subr.mxu0 0.0
    %671 = vmatpush1.msra.mxu0 0.0
    %672 = vmatprep.subr.mxu0 0.0
    %673 = vmatpush1.msra.mxu0 0.0
    %674 = vmatprep.subr.mxu0 0.0
    %675 = vmatpush1.msra.mxu0 0.0
    %676 = vmatprep.subr.mxu0 0.0
    %677 = vmatpush1.msra.mxu0 0.0
    %678 = vmatprep.subr.mxu0 0.0
    %679 = vmatpush1.msra.mxu0 0.0
    %680 = vmatprep.mubr.f32.mxu0 0.0
    %681 = vmatmul.mubr.f32.gmra.mrb[0].mxu0 %v614
    %v682 = vpop.f32.mrb[0].mxu0
    %v683 = vadd.f32 %v191, %v682
    %v684 = vpop.f32.mrb[0].mxu0
    %685 = vdwg.mxu0
    %v686 = vadd.f32 %v184, %v683
    %v687 = vxor.u32 %v686, 2147483648
    %v688 = vmul.f32 %v687, 1.442695
    %v689 = vpow.pop %v688
    %v690 = vadd.f32 %v689, 1.0
    %v691 = vrcp.pop %v690
    %v692 = vmul.f32 1.0, %v691
    %694 = vrot.lane.b32.xlu0 %v683, 64
    %v695 = vpop.permute.xlu0 %694
    %v697 = vmul.f32 %v692, %v695
    %699 = vrot.lane.b32.xlu0 %v697, 64
    %v700 = vpop.permute.xlu0 %699
    %v702 = vadd.f32 %v184, %v700
    %v703 = vtanh.pop %v702
    %v704 = vsub.f32 1.0, %v692
    %706 = vrot.lane.b32.xlu0 %v703, 96
    %v707 = vpop.permute.xlu0 %706
    %v709 = vmul.f32 %v704, %v707
    %v711 = vmul.f32 %v692, %v611
    %v712 = vadd.f32 %v709, %v711
    %714 = vrot.lane.b32.xlu0 %v712, 96
    %v715 = vpop.permute.xlu0 %714
    %v716 = vsel %vm193, %v715, 0
    %718 = vmatprep.subr.mxu0 0.0
    %719 = vmatpush1.msra.mxu0 %v93
    %720 = vmatprep.subr.mxu0 0.0
    %721 = vmatpush1.msra.mxu0 %v94
    %722 = vmatprep.subr.mxu0 0.0
    %723 = vmatpush1.msra.mxu0 %v95
    %724 = vmatprep.subr.mxu0 0.0
    %725 = vmatpush1.msra.mxu0 %v96
    %726 = vmatprep.subr.mxu0 0.0
    %727 = vmatpush1.msra.mxu0 0.0
    %728 = vmatprep.subr.mxu0 0.0
    %729 = vmatpush1.msra.mxu0 0.0
    %730 = vmatprep.subr.mxu0 0.0
    %731 = vmatpush1.msra.mxu0 0.0
    %732 = vmatprep.subr.mxu0 0.0
    %733 = vmatpush1.msra.mxu0 0.0
    %734 = vmatprep.subr.mxu0 0.0
    %735 = vmatpush1.msra.mxu0 0.0
    %736 = vmatprep.subr.mxu0 0.0
    %737 = vmatpush1.msra.mxu0 0.0
    %738 = vmatprep.subr.mxu0 0.0
    %739 = vmatpush1.msra.mxu0 0.0
    %740 = vmatprep.subr.mxu0 0.0
    %741 = vmatpush1.msra.mxu0 0.0
    %742 = vmatprep.subr.mxu0 0.0
    %743 = vmatpush1.msra.mxu0 0.0
    %744 = vmatprep.subr.mxu0 0.0
    %745 = vmatpush1.msra.mxu0 0.0
    %746 = vmatprep.subr.mxu0 0.0
    %747 = vmatpush1.msra.mxu0 0.0
    %748 = vmatprep.subr.mxu0 0.0
    %749 = vmatpush1.msra.mxu0 0.0
    %750 = vmatprep.subr.mxu0 0.0
    %751 = vmatpush1.msra.mxu0 0.0
    %752 = vmatprep.subr.mxu0 0.0
    %753 = vmatpush1.msra.mxu0 0.0
    %754 = vmatprep.subr.mxu0 0.0
    %755 = vmatpush1.msra.mxu0 0.0
    %756 = vmatprep.subr.mxu0 0.0
    %757 = vmatpush1.msra.mxu0 0.0
    %758 = vmatprep.subr.mxu0 0.0
    %759 = vmatpush1.msra.mxu0 0.0
    %760 = vmatprep.subr.mxu0 0.0
    %761 = vmatpush1.msra.mxu0 0.0
    %762 = vmatprep.subr.mxu0 0.0
    %763 = vmatpush1.msra.mxu0 0.0
    %764 = vmatprep.subr.mxu0 0.0
    %765 = vmatpush1.msra.mxu0 0.0
    %766 = vmatprep.subr.mxu0 0.0
    %767 = vmatpush1.msra.mxu0 0.0
    %768 = vmatprep.subr.mxu0 0.0
    %769 = vmatpush1.msra.mxu0 0.0
    %770 = vmatprep.subr.mxu0 0.0
    %771 = vmatpush1.msra.mxu0 0.0
    %772 = vmatprep.subr.mxu0 0.0
    %773 = vmatpush1.msra.mxu0 0.0
    %774 = vmatprep.subr.mxu0 0.0
    %775 = vmatpush1.msra.mxu0 0.0
    %776 = vmatprep.subr.mxu0 0.0
    %777 = vmatpush1.msra.mxu0 0.0
    %778 = vmatprep.subr.mxu0 0.0
    %779 = vmatpush1.msra.mxu0 0.0
    %780 = vmatprep.subr.mxu0 0.0
    %781 = vmatpush1.msra.mxu0 0.0
    %782 = vmatprep.mubr.f32.mxu0 0.0
    %783 = vmatmul.mubr.f32.gmra.mrb[0].mxu0 %v716
    %v784 = vpop.f32.mrb[0].mxu0
    %v785 = vadd.f32 %v191, %v784
    %v786 = vpop.f32.mrb[0].mxu0
    %787 = vdwg.mxu0
    %v789 = vrot.slane %v785, 6
    %v791 = vadd.f32 %v184, %v789
    %v792 = vxor.u32 %v791, 2147483648
    %v793 = vmul.f32 %v792, 1.442695
    %v794 = vpow.pop %v793
    %v795 = vadd.f32 %v794, 1.0
    %v796 = vrcp.pop %v795
    %v797 = vmul.f32 1.0, %v796
    %798 = vrot.lane.b32.xlu0 %v789, 64
    %v799 = vpop.permute.xlu0 %798
    %v801 = vmul.f32 %v797, %v799
    %803 = vrot.lane.b32.xlu0 %v801, 64
    %v804 = vpop.permute.xlu0 %803
    %v806 = vadd.f32 %v184, %v804
    %v807 = vtanh.pop %v806
    %v808 = vsub.f32 1.0, %v797
    %810 = vrot.lane.b32.xlu0 %v807, 96
    %v811 = vpop.permute.xlu0 %810
    %v813 = vmul.f32 %v808, %v811
    %v814 = vrot.slane %v712, 6
    %v816 = vmul.f32 %v797, %v814
    %v817 = vadd.f32 %v813, %v816
    %v819 = vrot.slane %v817, 2
    %820 = vrot.lane.b32.xlu0 %v819, 96
    %v821 = vpop.permute.xlu0 %820
    %v822 = vsel %vm193, %v821, 0
    %824 = vmatprep.subr.mxu0 0.0
    %825 = vmatpush1.msra.mxu0 %v93
    %826 = vmatprep.subr.mxu0 0.0
    %827 = vmatpush1.msra.mxu0 %v94
    %828 = vmatprep.subr.mxu0 0.0
    %829 = vmatpush1.msra.mxu0 %v95
    %830 = vmatprep.subr.mxu0 0.0
    %831 = vmatpush1.msra.mxu0 %v96
    %832 = vmatprep.subr.mxu0 0.0
    %833 = vmatpush1.msra.mxu0 0.0
    %834 = vmatprep.subr.mxu0 0.0
    %835 = vmatpush1.msra.mxu0 0.0
    %836 = vmatprep.subr.mxu0 0.0
    %837 = vmatpush1.msra.mxu0 0.0
    %838 = vmatprep.subr.mxu0 0.0
    %839 = vmatpush1.msra.mxu0 0.0
    %840 = vmatprep.subr.mxu0 0.0
    %841 = vmatpush1.msra.mxu0 0.0
    %842 = vmatprep.subr.mxu0 0.0
    %843 = vmatpush1.msra.mxu0 0.0
    %844 = vmatprep.subr.mxu0 0.0
    %845 = vmatpush1.msra.mxu0 0.0
    %846 = vmatprep.subr.mxu0 0.0
    %847 = vmatpush1.msra.mxu0 0.0
    %848 = vmatprep.subr.mxu0 0.0
    %849 = vmatpush1.msra.mxu0 0.0
    %850 = vmatprep.subr.mxu0 0.0
    %851 = vmatpush1.msra.mxu0 0.0
    %852 = vmatprep.subr.mxu0 0.0
    %853 = vmatpush1.msra.mxu0 0.0
    %854 = vmatprep.subr.mxu0 0.0
    %855 = vmatpush1.msra.mxu0 0.0
    %856 = vmatprep.subr.mxu0 0.0
    %857 = vmatpush1.msra.mxu0 0.0
    %858 = vmatprep.subr.mxu0 0.0
    %859 = vmatpush1.msra.mxu0 0.0
    %860 = vmatprep.subr.mxu0 0.0
    %861 = vmatpush1.msra.mxu0 0.0
    %862 = vmatprep.subr.mxu0 0.0
    %863 = vmatpush1.msra.mxu0 0.0
    %864 = vmatprep.subr.mxu0 0.0
    %865 = vmatpush1.msra.mxu0 0.0
    %866 = vmatprep.subr.mxu0 0.0
    %867 = vmatpush1.msra.mxu0 0.0
    %868 = vmatprep.subr.mxu0 0.0
    %869 = vmatpush1.msra.mxu0 0.0
    %870 = vmatprep.subr.mxu0 0.0
    %871 = vmatpush1.msra.mxu0 0.0
    %872 = vmatprep.subr.mxu0 0.0
    %873 = vmatpush1.msra.mxu0 0.0
    %874 = vmatprep.subr.mxu0 0.0
    %875 = vmatpush1.msra.mxu0 0.0
    %876 = vmatprep.subr.mxu0 0.0
    %877 = vmatpush1.msra.mxu0 0.0
    %878 = vmatprep.subr.mxu0 0.0
    %879 = vmatpush1.msra.mxu0 0.0
    %880 = vmatprep.subr.mxu0 0.0
    %881 = vmatpush1.msra.mxu0 0.0
    %882 = vmatprep.subr.mxu0 0.0
    %883 = vmatpush1.msra.mxu0 0.0
    %884 = vmatprep.subr.mxu0 0.0
    %885 = vmatpush1.msra.mxu0 0.0
    %886 = vmatprep.subr.mxu0 0.0
    %887 = vmatpush1.msra.mxu0 0.0
    %888 = vmatprep.mubr.f32.mxu0 0.0
    %889 = vmatmul.mubr.f32.gmra.mrb[0].mxu0 %v822
    %v890 = vpop.f32.mrb[0].mxu0
    %v891 = vadd.f32 %v191, %v890
    %v892 = vpop.f32.mrb[0].mxu0
    %893 = vdwg.mxu0
    %v895 = vrot.slane %v891, 4
    %v897 = vadd.f32 %v184, %v895
    %v898 = vxor.u32 %v897, 2147483648
    %v899 = vmul.f32 %v898, 1.442695
    %v900 = vpow.pop %v899
    %v901 = vadd.f32 %v900, 1.0
    %v902 = vrcp.pop %v901
    %v903 = vmul.f32 1.0, %v902
    %904 = vrot.lane.b32.xlu0 %v895, 64
    %v905 = vpop.permute.xlu0 %904
    %v907 = vmul.f32 %v903, %v905
    %909 = vrot.lane.b32.xlu0 %v907, 64
    %v910 = vpop.permute.xlu0 %909
    %v912 = vadd.f32 %v184, %v910
    %v913 = vtanh.pop %v912
    %v914 = vsub.f32 1.0, %v903
    %916 = vrot.lane.b32.xlu0 %v913, 96
    %v917 = vpop.permute.xlu0 %916
    %v919 = vmul.f32 %v914, %v917
    %v920 = vrot.slane %v817, 6
    %v922 = vmul.f32 %v903, %v920
    %v923 = vadd.f32 %v919, %v922
    %v925 = vrot.slane %v923, 4
    %926 = vrot.lane.b32.xlu0 %v925, 96
    %v927 = vpop.permute.xlu0 %926
    %v928 = vsel %vm193, %v927, 0
    %930 = vmatprep.subr.mxu0 0.0
    %931 = vmatpush1.msra.mxu0 %v93
    %932 = vmatprep.subr.mxu0 0.0
    %933 = vmatpush1.msra.mxu0 %v94
    %934 = vmatprep.subr.mxu0 0.0
    %935 = vmatpush1.msra.mxu0 %v95
    %936 = vmatprep.subr.mxu0 0.0
    %937 = vmatpush1.msra.mxu0 %v96
    %938 = vmatprep.subr.mxu0 0.0
    %939 = vmatpush1.msra.mxu0 0.0
    %940 = vmatprep.subr.mxu0 0.0
    %941 = vmatpush1.msra.mxu0 0.0
    %942 = vmatprep.subr.mxu0 0.0
    %943 = vmatpush1.msra.mxu0 0.0
    %944 = vmatprep.subr.mxu0 0.0
    %945 = vmatpush1.msra.mxu0 0.0
    %946 = vmatprep.subr.mxu0 0.0
    %947 = vmatpush1.msra.mxu0 0.0
    %948 = vmatprep.subr.mxu0 0.0
    %949 = vmatpush1.msra.mxu0 0.0
    %950 = vmatprep.subr.mxu0 0.0
    %951 = vmatpush1.msra.mxu0 0.0
    %952 = vmatprep.subr.mxu0 0.0
    %953 = vmatpush1.msra.mxu0 0.0
    %954 = vmatprep.subr.mxu0 0.0
    %955 = vmatpush1.msra.mxu0 0.0
    %956 = vmatprep.subr.mxu0 0.0
    %957 = vmatpush1.msra.mxu0 0.0
    %958 = vmatprep.subr.mxu0 0.0
    %959 = vmatpush1.msra.mxu0 0.0
    %960 = vmatprep.subr.mxu0 0.0
    %961 = vmatpush1.msra.mxu0 0.0
    %962 = vmatprep.subr.mxu0 0.0
    %963 = vmatpush1.msra.mxu0 0.0
    %964 = vmatprep.subr.mxu0 0.0
    %965 = vmatpush1.msra.mxu0 0.0
    %966 = vmatprep.subr.mxu0 0.0
    %967 = vmatpush1.msra.mxu0 0.0
    %968 = vmatprep.subr.mxu0 0.0
    %969 = vmatpush1.msra.mxu0 0.0
    %970 = vmatprep.subr.mxu0 0.0
    %971 = vmatpush1.msra.mxu0 0.0
    %972 = vmatprep.subr.mxu0 0.0
    %973 = vmatpush1.msra.mxu0 0.0
    %974 = vmatprep.subr.mxu0 0.0
    %975 = vmatpush1.msra.mxu0 0.0
    %976 = vmatprep.subr.mxu0 0.0
    %977 = vmatpush1.msra.mxu0 0.0
    %978 = vmatprep.subr.mxu0 0.0
    %979 = vmatpush1.msra.mxu0 0.0
    %980 = vmatprep.subr.mxu0 0.0
    %981 = vmatpush1.msra.mxu0 0.0
    %982 = vmatprep.subr.mxu0 0.0
    %983 = vmatpush1.msra.mxu0 0.0
    %984 = vmatprep.subr.mxu0 0.0
    %985 = vmatpush1.msra.mxu0 0.0
    %986 = vmatprep.subr.mxu0 0.0
    %987 = vmatpush1.msra.mxu0 0.0
    %988 = vmatprep.subr.mxu0 0.0
    %989 = vmatpush1.msra.mxu0 0.0
    %990 = vmatprep.subr.mxu0 0.0
    %991 = vmatpush1.msra.mxu0 0.0
    %992 = vmatprep.subr.mxu0 0.0
    %993 = vmatpush1.msra.mxu0 0.0
    %994 = vmatprep.mubr.f32.mxu0 0.0
    %995 = vmatmul.mubr.f32.gmra.mrb[0].mxu0 %v928
    %v996 = vpop.f32.mrb[0].mxu0
    %v997 = vadd.f32 %v191, %v996
    %v998 = vpop.f32.mrb[0].mxu0
    %999 = vdwg.mxu0
    %v1001 = vrot.slane %v997, 2
    %v1003 = vadd.f32 %v184, %v1001
    %v1004 = vxor.u32 %v1003, 2147483648
    %v1005 = vmul.f32 %v1004, 1.442695
    %v1006 = vpow.pop %v1005
    %v1007 = vadd.f32 %v1006, 1.0
    %v1008 = vrcp.pop %v1007
    %v1009 = vmul.f32 1.0, %v1008
    %1010 = vrot.lane.b32.xlu0 %v1001, 64
    %v1011 = vpop.permute.xlu0 %1010
    %v1013 = vmul.f32 %v1009, %v1011
    %1015 = vrot.lane.b32.xlu0 %v1013, 64
    %v1016 = vpop.permute.xlu0 %1015
    %v1018 = vadd.f32 %v184, %v1016
    %v1019 = vtanh.pop %v1018
    %v1020 = vsub.f32 1.0, %v1009
    %1022 = vrot.lane.b32.xlu0 %v1019, 96
    %v1023 = vpop.permute.xlu0 %1022
    %v1025 = vmul.f32 %v1020, %v1023
    %v1026 = vrot.slane %v923, 6
    %v1028 = vmul.f32 %v1009, %v1026
    %v1029 = vadd.f32 %v1025, %v1028
    %vm1030 = vcmask 1041408
    %v1031 = vsel %vm1030, %v292, %v397
    %vm1032 = vcmask 1043456
    %v1033 = vsel %vm1032, %v1031, %v503
    %vm1034 = vcmask 1045504
    %v1035 = vsel %vm1034, %v1033, %v609
    %v1036 = vsel %vm1030, %v712, %v817
    %v1037 = vsel %vm1032, %v1036, %v923
    %v1038 = vsel %vm1034, %v1037, %v1029
    %v1039 = vld [vmem:[#allocation4] sm:$0xff]
    %v1040 = vld [vmem:[#allocation4 + $0x8] sm:$0xff]
    %v1041 = vld [vmem:[#allocation4 + $0x10] sm:$0xff]
    %v1042 = vld [vmem:[#allocation4 + $0x18] sm:$0xff]
    %v1043 = vld [vmem:[%s6] sm:$0xff]
    %v1044 = vld [vmem:[%s6 + $0x8] sm:$0xff]
    %v1045 = vld [vmem:[%s6 + $0x10] sm:$0xff]
    %v1046 = vld [vmem:[%s6 + $0x18] sm:$0xff]
    %v1047 = vld [vmem:[#allocation6] sm:$0x1]
    %v1048 = vld [vmem:[#allocation7] sm:$0x1]
    %v1050 = vlaneseq
    %v1051 = vshrl.u32 %v1050, 7
    %v1052 = vsub.s32 0, %v1051
    %v1053 = vrot.slane %v1047, %v1052
    %1057 = vrot.lane.b32.xlu0 %v1035, 96
    %v1058 = vpop.permute.xlu0 %1057
    %1059 = vrot.lane.b32.xlu0 %v1038, 96
    %v1060 = vpop.permute.xlu0 %1059
    %v1061 = vsel %vm193, %v1058, 0
    %v1063 = vsel %vm193, %v1060, 0
    %1065 = vmatprep.subr.mxu0 0.0
    %1066 = vmatpush1.msra.mxu0 %v1039
    %1067 = vmatprep.subr.mxu0 0.0
    %1068 = vmatpush1.msra.mxu0 %v1040
    %1069 = vmatprep.subr.mxu0 0.0
    %1070 = vmatpush1.msra.mxu0 %v1041
    %1071 = vmatprep.subr.mxu0 0.0
    %1072 = vmatpush1.msra.mxu0 %v1042
    %1073 = vmatprep.subr.mxu0 0.0
    %1074 = vmatpush1.msra.mxu0 0.0
    %1075 = vmatprep.subr.mxu0 0.0
    %1076 = vmatpush1.msra.mxu0 0.0
    %1077 = vmatprep.subr.mxu0 0.0
    %1078 = vmatpush1.msra.mxu0 0.0
    %1079 = vmatprep.subr.mxu0 0.0
    %1080 = vmatpush1.msra.mxu0 0.0
    %1081 = vmatprep.subr.mxu0 0.0
    %1082 = vmatpush1.msra.mxu0 0.0
    %1083 = vmatprep.subr.mxu0 0.0
    %1084 = vmatpush1.msra.mxu0 0.0
    %1085 = vmatprep.subr.mxu0 0.0
    %1086 = vmatpush1.msra.mxu0 0.0
    %1087 = vmatprep.subr.mxu0 0.0
    %1088 = vmatpush1.msra.mxu0 0.0
    %1089 = vmatprep.subr.mxu0 0.0
    %1090 = vmatpush1.msra.mxu0 0.0
    %1091 = vmatprep.subr.mxu0 0.0
    %1092 = vmatpush1.msra.mxu0 0.0
    %1093 = vmatprep.subr.mxu0 0.0
    %1094 = vmatpush1.msra.mxu0 0.0
    %1095 = vmatprep.subr.mxu0 0.0
    %1096 = vmatpush1.msra.mxu0 0.0
    %1097 = vmatprep.subr.mxu0 0.0
    %1098 = vmatpush1.msra.mxu0 0.0
    %1099 = vmatprep.subr.mxu0 0.0
    %1100 = vmatpush1.msra.mxu0 0.0
    %1101 = vmatprep.subr.mxu0 0.0
    %1102 = vmatpush1.msra.mxu0 0.0
    %1103 = vmatprep.subr.mxu0 0.0
    %1104 = vmatpush1.msra.mxu0 0.0
    %1105 = vmatprep.subr.mxu0 0.0
    %1106 = vmatpush1.msra.mxu0 0.0
    %1107 = vmatprep.subr.mxu0 0.0
    %1108 = vmatpush1.msra.mxu0 0.0
    %1109 = vmatprep.subr.mxu0 0.0
    %1110 = vmatpush1.msra.mxu0 0.0
    %1111 = vmatprep.subr.mxu0 0.0
    %1112 = vmatpush1.msra.mxu0 0.0
    %1113 = vmatprep.subr.mxu0 0.0
    %1114 = vmatpush1.msra.mxu0 0.0
    %1115 = vmatprep.subr.mxu0 0.0
    %1116 = vmatpush1.msra.mxu0 0.0
    %1117 = vmatprep.subr.mxu0 0.0
    %1118 = vmatpush1.msra.mxu0 0.0
    %1119 = vmatprep.subr.mxu0 0.0
    %1120 = vmatpush1.msra.mxu0 0.0
    %1121 = vmatprep.subr.mxu0 0.0
    %1122 = vmatpush1.msra.mxu0 0.0
    %1123 = vmatprep.subr.mxu0 0.0
    %1124 = vmatpush1.msra.mxu0 0.0
    %1125 = vmatprep.subr.mxu0 0.0
    %1126 = vmatpush1.msra.mxu0 0.0
    %1127 = vmatprep.subr.mxu0 0.0
    %1128 = vmatpush1.msra.mxu0 0.0
    %1129 = vmatprep.mubr.f32.mxu0 0.0
    %1130 = vmatmul.mubr.f32.gmra.mrb[0].mxu0 %v1061
    %v1131 = vpop.f32.mrb[0].mxu0
    %v1132 = vadd.f32 %v1053, %v1131
    %v1133 = vpop.f32.mrb[0].mxu0
    %1134 = vmatprep.mubr.f32.mxu0 0.0
    %1135 = vmatmul.mubr.f32.gmra.mrb[0].mxu0 %v1063
    %v1136 = vpop.f32.mrb[0].mxu0
    %v1137 = vadd.f32 %v1053, %v1136
    %v1138 = vpop.f32.mrb[0].mxu0
    %1139 = vdwg.mxu0
    %v1141 = vlaneseq
    %v1142 = vshrl.u32 %v1141, 7
    %v1143 = vsub.s32 0, %v1142
    %v1144 = vrot.slane %v1048, %v1143
    %1146 = vmatprep.subr.mxu0 0.0
    %1147 = vmatpush1.msra.mxu0 %v1043
    %1148 = vmatprep.subr.mxu0 0.0
    %1149 = vmatpush1.msra.mxu0 %v1044
    %1150 = vmatprep.subr.mxu0 0.0
    %1151 = vmatpush1.msra.mxu0 %v1045
    %1152 = vmatprep.subr.mxu0 0.0
    %1153 = vmatpush1.msra.mxu0 %v1046
    %1154 = vmatprep.subr.mxu0 0.0
    %1155 = vmatpush1.msra.mxu0 0.0
    %1156 = vmatprep.subr.mxu0 0.0
    %1157 = vmatpush1.msra.mxu0 0.0
    %1158 = vmatprep.subr.mxu0 0.0
    %1159 = vmatpush1.msra.mxu0 0.0
    %1160 = vmatprep.subr.mxu0 0.0
    %1161 = vmatpush1.msra.mxu0 0.0
    %1162 = vmatprep.subr.mxu0 0.0
    %1163 = vmatpush1.msra.mxu0 0.0
    %1164 = vmatprep.subr.mxu0 0.0
    %1165 = vmatpush1.msra.mxu0 0.0
    %1166 = vmatprep.subr.mxu0 0.0
    %1167 = vmatpush1.msra.mxu0 0.0
    %1168 = vmatprep.subr.mxu0 0.0
    %1169 = vmatpush1.msra.mxu0 0.0
    %1170 = vmatprep.subr.mxu0 0.0
    %1171 = vmatpush1.msra.mxu0 0.0
    %1172 = vmatprep.subr.mxu0 0.0
    %1173 = vmatpush1.msra.mxu0 0.0
    %1174 = vmatprep.subr.mxu0 0.0
    %1175 = vmatpush1.msra.mxu0 0.0
    %1176 = vmatprep.subr.mxu0 0.0
    %1177 = vmatpush1.msra.mxu0 0.0
    %1178 = vmatprep.subr.mxu0 0.0
    %1179 = vmatpush1.msra.mxu0 0.0
    %1180 = vmatprep.subr.mxu0 0.0
    %1181 = vmatpush1.msra.mxu0 0.0
    %1182 = vmatprep.subr.mxu0 0.0
    %1183 = vmatpush1.msra.mxu0 0.0
    %1184 = vmatprep.subr.mxu0 0.0
    %1185 = vmatpush1.msra.mxu0 0.0
    %1186 = vmatprep.subr.mxu0 0.0
    %1187 = vmatpush1.msra.mxu0 0.0
    %1188 = vmatprep.subr.mxu0 0.0
    %1189 = vmatpush1.msra.mxu0 0.0
    %1190 = vmatprep.subr.mxu0 0.0
    %1191 = vmatpush1.msra.mxu0 0.0
    %1192 = vmatprep.subr.mxu0 0.0
    %1193 = vmatpush1.msra.mxu0 0.0
    %1194 = vmatprep.subr.mxu0 0.0
    %1195 = vmatpush1.msra.mxu0 0.0
    %1196 = vmatprep.subr.mxu0 0.0
    %1197 = vmatpush1.msra.mxu0 0.0
    %1198 = vmatprep.subr.mxu0 0.0
    %1199 = vmatpush1.msra.mxu0 0.0
    %1200 = vmatprep.subr.mxu0 0.0
    %1201 = vmatpush1.msra.mxu0 0.0
    %1202 = vmatprep.subr.mxu0 0.0
    %1203 = vmatpush1.msra.mxu0 0.0
    %1204 = vmatprep.subr.mxu0 0.0
    %1205 = vmatpush1.msra.mxu0 0.0
    %1206 = vmatprep.subr.mxu0 0.0
    %1207 = vmatpush1.msra.mxu0 0.0
    %1208 = vmatprep.subr.mxu0 0.0
    %1209 = vmatpush1.msra.mxu0 0.0
    %1210 = vmatprep.mubr.f32.mxu0 0.0
    %1211 = vmatmul.mubr.f32.gmra.mrb[0].mxu0 %v195
    %v1212 = vpop.f32.mrb[0].mxu0
    %v1213 = vadd.f32 %v1144, %v1212
    %v1214 = vpop.f32.mrb[0].mxu0
    %1215 = vdwg.mxu0
    %v1216 = vadd.f32 %v1132, %v1213
    %v1217 = vxor.u32 %v1216, 2147483648
    %v1218 = vmul.f32 %v1217, 1.442695
    %v1219 = vpow.pop %v1218
    %v1220 = vadd.f32 %v1219, 1.0
    %v1221 = vrcp.pop %v1220
    %v1222 = vmul.f32 1.0, %v1221
    %1224 = vrot.lane.b32.xlu0 %v1213, 64
    %v1225 = vpop.permute.xlu0 %1224
    %v1227 = vmul.f32 %v1222, %v1225
    %1229 = vrot.lane.b32.xlu0 %v1227, 64
    %v1230 = vpop.permute.xlu0 %1229
    %v1232 = vadd.f32 %v1132, %v1230
    %v1233 = vtanh.pop %v1232
    %v1234 = vsub.f32 1.0, %v1222
    %1236 = vrot.lane.b32.xlu0 %v1233, 96
    %v1237 = vpop.permute.xlu0 %1236
    %v1239 = vmul.f32 %v1234, %v1237
    %v1240 = vmul.f32 %v1222, 0.0
    %v1241 = vadd.f32 %v1239, %v1240
    %1243 = vrot.lane.b32.xlu0 %v1241, 96
    %v1244 = vpop.permute.xlu0 %1243
    %v1245 = vsel %vm193, %v1244, 0
    %1247 = vmatprep.subr.mxu0 0.0
    %1248 = vmatpush1.msra.mxu0 %v1043
    %1249 = vmatprep.subr.mxu0 0.0
    %1250 = vmatpush1.msra.mxu0 %v1044
    %1251 = vmatprep.subr.mxu0 0.0
    %1252 = vmatpush1.msra.mxu0 %v1045
    %1253 = vmatprep.subr.mxu0 0.0
    %1254 = vmatpush1.msra.mxu0 %v1046
    %1255 = vmatprep.subr.mxu0 0.0
    %1256 = vmatpush1.msra.mxu0 0.0
    %1257 = vmatprep.subr.mxu0 0.0
    %1258 = vmatpush1.msra.mxu0 0.0
    %1259 = vmatprep.subr.mxu0 0.0
    %1260 = vmatpush1.msra.mxu0 0.0
    %1261 = vmatprep.subr.mxu0 0.0
    %1262 = vmatpush1.msra.mxu0 0.0
    %1263 = vmatprep.subr.mxu0 0.0
    %1264 = vmatpush1.msra.mxu0 0.0
    %1265 = vmatprep.subr.mxu0 0.0
    %1266 = vmatpush1.msra.mxu0 0.0
    %1267 = vmatprep.subr.mxu0 0.0
    %1268 = vmatpush1.msra.mxu0 0.0
    %1269 = vmatprep.subr.mxu0 0.0
    %1270 = vmatpush1.msra.mxu0 0.0
    %1271 = vmatprep.subr.mxu0 0.0
    %1272 = vmatpush1.msra.mxu0 0.0
    %1273 = vmatprep.subr.mxu0 0.0
    %1274 = vmatpush1.msra.mxu0 0.0
    %1275 = vmatprep.subr.mxu0 0.0
    %1276 = vmatpush1.msra.mxu0 0.0
    %1277 = vmatprep.subr.mxu0 0.0
    %1278 = vmatpush1.msra.mxu0 0.0
    %1279 = vmatprep.subr.mxu0 0.0
    %1280 = vmatpush1.msra.mxu0 0.0
    %1281 = vmatprep.subr.mxu0 0.0
    %1282 = vmatpush1.msra.mxu0 0.0
    %1283 = vmatprep.subr.mxu0 0.0
    %1284 = vmatpush1.msra.mxu0 0.0
    %1285 = vmatprep.subr.mxu0 0.0
    %1286 = vmatpush1.msra.mxu0 0.0
    %1287 = vmatprep.subr.mxu0 0.0
    %1288 = vmatpush1.msra.mxu0 0.0
    %1289 = vmatprep.subr.mxu0 0.0
    %1290 = vmatpush1.msra.mxu0 0.0
    %1291 = vmatprep.subr.mxu0 0.0
    %1292 = vmatpush1.msra.mxu0 0.0
    %1293 = vmatprep.subr.mxu0 0.0
    %1294 = vmatpush1.msra.mxu0 0.0
    %1295 = vmatprep.subr.mxu0 0.0
    %1296 = vmatpush1.msra.mxu0 0.0
    %1297 = vmatprep.subr.mxu0 0.0
    %1298 = vmatpush1.msra.mxu0 0.0
    %1299 = vmatprep.subr.mxu0 0.0
    %1300 = vmatpush1.msra.mxu0 0.0
    %1301 = vmatprep.subr.mxu0 0.0
    %1302 = vmatpush1.msra.mxu0 0.0
    %1303 = vmatprep.subr.mxu0 0.0
    %1304 = vmatpush1.msra.mxu0 0.0
    %1305 = vmatprep.subr.mxu0 0.0
    %1306 = vmatpush1.msra.mxu0 0.0
    %1307 = vmatprep.subr.mxu0 0.0
    %1308 = vmatpush1.msra.mxu0 0.0
    %1309 = vmatprep.subr.mxu0 0.0
    %1310 = vmatpush1.msra.mxu0 0.0
    %1311 = vmatprep.mubr.f32.mxu0 0.0
    %1312 = vmatmul.mubr.f32.gmra.mrb[0].mxu0 %v1245
    %v1313 = vpop.f32.mrb[0].mxu0
    %v1314 = vadd.f32 %v1144, %v1313
    %v1315 = vpop.f32.mrb[0].mxu0
    %1316 = vdwg.mxu0
    %v1318 = vrot.slane %v1314, 6
    %v1320 = vadd.f32 %v1132, %v1318
    %v1321 = vxor.u32 %v1320, 2147483648
    %v1322 = vmul.f32 %v1321, 1.442695
    %v1323 = vpow.pop %v1322
    %v1324 = vadd.f32 %v1323, 1.0
    %v1325 = vrcp.pop %v1324
    %v1326 = vmul.f32 1.0, %v1325
    %1327 = vrot.lane.b32.xlu0 %v1318, 64
    %v1328 = vpop.permute.xlu0 %1327
    %v1330 = vmul.f32 %v1326, %v1328
    %1332 = vrot.lane.b32.xlu0 %v1330, 64
    %v1333 = vpop.permute.xlu0 %1332
    %v1335 = vadd.f32 %v1132, %v1333
    %v1336 = vtanh.pop %v1335
    %v1337 = vsub.f32 1.0, %v1326
    %1339 = vrot.lane.b32.xlu0 %v1336, 96
    %v1340 = vpop.permute.xlu0 %1339
    %v1342 = vmul.f32 %v1337, %v1340
    %v1343 = vrot.slane %v1241, 6
    %v1345 = vmul.f32 %v1326, %v1343
    %v1346 = vadd.f32 %v1342, %v1345
    %v1348 = vrot.slane %v1346, 2
    %1349 = vrot.lane.b32.xlu0 %v1348, 96
    %v1350 = vpop.permute.xlu0 %1349
    %v1351 = vsel %vm193, %v1350, 0
    %1353 = vmatprep.subr.mxu0 0.0
    %1354 = vmatpush1.msra.mxu0 %v1043
    %1355 = vmatprep.subr.mxu0 0.0
    %1356 = vmatpush1.msra.mxu0 %v1044
    %1357 = vmatprep.subr.mxu0 0.0
    %1358 = vmatpush1.msra.mxu0 %v1045
    %1359 = vmatprep.subr.mxu0 0.0
    %1360 = vmatpush1.msra.mxu0 %v1046
    %1361 = vmatprep.subr.mxu0 0.0
    %1362 = vmatpush1.msra.mxu0 0.0
    %1363 = vmatprep.subr.mxu0 0.0
    %1364 = vmatpush1.msra.mxu0 0.0
    %1365 = vmatprep.subr.mxu0 0.0
    %1366 = vmatpush1.msra.mxu0 0.0
    %1367 = vmatprep.subr.mxu0 0.0
    %1368 = vmatpush1.msra.mxu0 0.0
    %1369 = vmatprep.subr.mxu0 0.0
    %1370 = vmatpush1.msra.mxu0 0.0
    %1371 = vmatprep.subr.mxu0 0.0
    %1372 = vmatpush1.msra.mxu0 0.0
    %1373 = vmatprep.subr.mxu0 0.0
    %1374 = vmatpush1.msra.mxu0 0.0
    %1375 = vmatprep.subr.mxu0 0.0
    %1376 = vmatpush1.msra.mxu0 0.0
    %1377 = vmatprep.subr.mxu0 0.0
    %1378 = vmatpush1.msra.mxu0 0.0
    %1379 = vmatprep.subr.mxu0 0.0
    %1380 = vmatpush1.msra.mxu0 0.0
    %1381 = vmatprep.subr.mxu0 0.0
    %1382 = vmatpush1.msra.mxu0 0.0
    %1383 = vmatprep.subr.mxu0 0.0
    %1384 = vmatpush1.msra.mxu0 0.0
    %1385 = vmatprep.subr.mxu0 0.0
    %1386 = vmatpush1.msra.mxu0 0.0
    %1387 = vmatprep.subr.mxu0 0.0
    %1388 = vmatpush1.msra.mxu0 0.0
    %1389 = vmatprep.subr.mxu0 0.0
    %1390 = vmatpush1.msra.mxu0 0.0
    %1391 = vmatprep.subr.mxu0 0.0
    %1392 = vmatpush1.msra.mxu0 0.0
    %1393 = vmatprep.subr.mxu0 0.0
    %1394 = vmatpush1.msra.mxu0 0.0
    %1395 = vmatprep.subr.mxu0 0.0
    %1396 = vmatpush1.msra.mxu0 0.0
    %1397 = vmatprep.subr.mxu0 0.0
    %1398 = vmatpush1.msra.mxu0 0.0
    %1399 = vmatprep.subr.mxu0 0.0
    %1400 = vmatpush1.msra.mxu0 0.0
    %1401 = vmatprep.subr.mxu0 0.0
    %1402 = vmatpush1.msra.mxu0 0.0
    %1403 = vmatprep.subr.mxu0 0.0
    %1404 = vmatpush1.msra.mxu0 0.0
    %1405 = vmatprep.subr.mxu0 0.0
    %1406 = vmatpush1.msra.mxu0 0.0
    %1407 = vmatprep.subr.mxu0 0.0
    %1408 = vmatpush1.msra.mxu0 0.0
    %1409 = vmatprep.subr.mxu0 0.0
    %1410 = vmatpush1.msra.mxu0 0.0
    %1411 = vmatprep.subr.mxu0 0.0
    %1412 = vmatpush1.msra.mxu0 0.0
    %1413 = vmatprep.subr.mxu0 0.0
    %1414 = vmatpush1.msra.mxu0 0.0
    %1415 = vmatprep.subr.mxu0 0.0
    %1416 = vmatpush1.msra.mxu0 0.0
    %1417 = vmatprep.mubr.f32.mxu0 0.0
    %1418 = vmatmul.mubr.f32.gmra.mrb[0].mxu0 %v1351
    %v1419 = vpop.f32.mrb[0].mxu0
    %v1420 = vadd.f32 %v1144, %v1419
    %v1421 = vpop.f32.mrb[0].mxu0
    %1422 = vdwg.mxu0
    %v1424 = vrot.slane %v1420, 4
    %v1426 = vadd.f32 %v1132, %v1424
    %v1427 = vxor.u32 %v1426, 2147483648
    %v1428 = vmul.f32 %v1427, 1.442695
    %v1429 = vpow.pop %v1428
    %v1430 = vadd.f32 %v1429, 1.0
    %v1431 = vrcp.pop %v1430
    %v1432 = vmul.f32 1.0, %v1431
    %1433 = vrot.lane.b32.xlu0 %v1424, 64
    %v1434 = vpop.permute.xlu0 %1433
    %v1436 = vmul.f32 %v1432, %v1434
    %1438 = vrot.lane.b32.xlu0 %v1436, 64
    %v1439 = vpop.permute.xlu0 %1438
    %v1441 = vadd.f32 %v1132, %v1439
    %v1442 = vtanh.pop %v1441
    %v1443 = vsub.f32 1.0, %v1432
    %1445 = vrot.lane.b32.xlu0 %v1442, 96
    %v1446 = vpop.permute.xlu0 %1445
    %v1448 = vmul.f32 %v1443, %v1446
    %v1449 = vrot.slane %v1346, 6
    %v1451 = vmul.f32 %v1432, %v1449
    %v1452 = vadd.f32 %v1448, %v1451
    %v1454 = vrot.slane %v1452, 4
    %1455 = vrot.lane.b32.xlu0 %v1454, 96
    %v1456 = vpop.permute.xlu0 %1455
    %v1457 = vsel %vm193, %v1456, 0
    %1459 = vmatprep.subr.mxu0 0.0
    %1460 = vmatpush1.msra.mxu0 %v1043
    %1461 = vmatprep.subr.mxu0 0.0
    %1462 = vmatpush1.msra.mxu0 %v1044
    %1463 = vmatprep.subr.mxu0 0.0
    %1464 = vmatpush1.msra.mxu0 %v1045
    %1465 = vmatprep.subr.mxu0 0.0
    %1466 = vmatpush1.msra.mxu0 %v1046
    %1467 = vmatprep.subr.mxu0 0.0
    %1468 = vmatpush1.msra.mxu0 0.0
    %1469 = vmatprep.subr.mxu0 0.0
    %1470 = vmatpush1.msra.mxu0 0.0
    %1471 = vmatprep.subr.mxu0 0.0
    %1472 = vmatpush1.msra.mxu0 0.0
    %1473 = vmatprep.subr.mxu0 0.0
    %1474 = vmatpush1.msra.mxu0 0.0
    %1475 = vmatprep.subr.mxu0 0.0
    %1476 = vmatpush1.msra.mxu0 0.0
    %1477 = vmatprep.subr.mxu0 0.0
    %1478 = vmatpush1.msra.mxu0 0.0
    %1479 = vmatprep.subr.mxu0 0.0
    %1480 = vmatpush1.msra.mxu0 0.0
    %1481 = vmatprep.subr.mxu0 0.0
    %1482 = vmatpush1.msra.mxu0 0.0
    %1483 = vmatprep.subr.mxu0 0.0
    %1484 = vmatpush1.msra.mxu0 0.0
    %1485 = vmatprep.subr.mxu0 0.0
    %1486 = vmatpush1.msra.mxu0 0.0
    %1487 = vmatprep.subr.mxu0 0.0
    %1488 = vmatpush1.msra.mxu0 0.0
    %1489 = vmatprep.subr.mxu0 0.0
    %1490 = vmatpush1.msra.mxu0 0.0
    %1491 = vmatprep.subr.mxu0 0.0
    %1492 = vmatpush1.msra.mxu0 0.0
    %1493 = vmatprep.subr.mxu0 0.0
    %1494 = vmatpush1.msra.mxu0 0.0
    %1495 = vmatprep.subr.mxu0 0.0
    %1496 = vmatpush1.msra.mxu0 0.0
    %1497 = vmatprep.subr.mxu0 0.0
    %1498 = vmatpush1.msra.mxu0 0.0
    %1499 = vmatprep.subr.mxu0 0.0
    %1500 = vmatpush1.msra.mxu0 0.0
    %1501 = vmatprep.subr.mxu0 0.0
    %1502 = vmatpush1.msra.mxu0 0.0
    %1503 = vmatprep.subr.mxu0 0.0
    %1504 = vmatpush1.msra.mxu0 0.0
    %1505 = vmatprep.subr.mxu0 0.0
    %1506 = vmatpush1.msra.mxu0 0.0
    %1507 = vmatprep.subr.mxu0 0.0
    %1508 = vmatpush1.msra.mxu0 0.0
    %1509 = vmatprep.subr.mxu0 0.0
    %1510 = vmatpush1.msra.mxu0 0.0
    %1511 = vmatprep.subr.mxu0 0.0
    %1512 = vmatpush1.msra.mxu0 0.0
    %1513 = vmatprep.subr.mxu0 0.0
    %1514 = vmatpush1.msra.mxu0 0.0
    %1515 = vmatprep.subr.mxu0 0.0
    %1516 = vmatpush1.msra.mxu0 0.0
    %1517 = vmatprep.subr.mxu0 0.0
    %1518 = vmatpush1.msra.mxu0 0.0
    %1519 = vmatprep.subr.mxu0 0.0
    %1520 = vmatpush1.msra.mxu0 0.0
    %1521 = vmatprep.subr.mxu0 0.0
    %1522 = vmatpush1.msra.mxu0 0.0
    %1523 = vmatprep.mubr.f32.mxu0 0.0
    %1524 = vmatmul.mubr.f32.gmra.mrb[0].mxu0 %v1457
    %v1525 = vpop.f32.mrb[0].mxu0
    %v1526 = vadd.f32 %v1144, %v1525
    %v1527 = vpop.f32.mrb[0].mxu0
    %1528 = vdwg.mxu0
    %v1530 = vrot.slane %v1526, 2
    %v1532 = vadd.f32 %v1132, %v1530
    %v1533 = vxor.u32 %v1532, 2147483648
    %v1534 = vmul.f32 %v1533, 1.442695
    %v1535 = vpow.pop %v1534
    %v1536 = vadd.f32 %v1535, 1.0
    %v1537 = vrcp.pop %v1536
    %v1538 = vmul.f32 1.0, %v1537
    %1539 = vrot.lane.b32.xlu0 %v1530, 64
    %v1540 = vpop.permute.xlu0 %1539
    %v1542 = vmul.f32 %v1538, %v1540
    %1544 = vrot.lane.b32.xlu0 %v1542, 64
    %v1545 = vpop.permute.xlu0 %1544
    %v1547 = vadd.f32 %v1132, %v1545
    %v1548 = vtanh.pop %v1547
    %v1549 = vsub.f32 1.0, %v1538
    %1551 = vrot.lane.b32.xlu0 %v1548, 96
    %v1552 = vpop.permute.xlu0 %1551
    %v1554 = vmul.f32 %v1549, %v1552
    %v1555 = vrot.slane %v1452, 6
    %v1557 = vmul.f32 %v1538, %v1555
    %v1558 = vadd.f32 %v1554, %v1557
    %v1560 = vrot.slane %v1558, 6
    %1561 = vrot.lane.b32.xlu0 %v1560, 96
    %v1562 = vpop.permute.xlu0 %1561
    %v1563 = vsel %vm193, %v1562, 0
    %1565 = vmatprep.subr.mxu0 0.0
    %1566 = vmatpush1.msra.mxu0 %v1043
    %1567 = vmatprep.subr.mxu0 0.0
    %1568 = vmatpush1.msra.mxu0 %v1044
    %1569 = vmatprep.subr.mxu0 0.0
    %1570 = vmatpush1.msra.mxu0 %v1045
    %1571 = vmatprep.subr.mxu0 0.0
    %1572 = vmatpush1.msra.mxu0 %v1046
    %1573 = vmatprep.subr.mxu0 0.0
    %1574 = vmatpush1.msra.mxu0 0.0
    %1575 = vmatprep.subr.mxu0 0.0
    %1576 = vmatpush1.msra.mxu0 0.0
    %1577 = vmatprep.subr.mxu0 0.0
    %1578 = vmatpush1.msra.mxu0 0.0
    %1579 = vmatprep.subr.mxu0 0.0
    %1580 = vmatpush1.msra.mxu0 0.0
    %1581 = vmatprep.subr.mxu0 0.0
    %1582 = vmatpush1.msra.mxu0 0.0
    %1583 = vmatprep.subr.mxu0 0.0
    %1584 = vmatpush1.msra.mxu0 0.0
    %1585 = vmatprep.subr.mxu0 0.0
    %1586 = vmatpush1.msra.mxu0 0.0
    %1587 = vmatprep.subr.mxu0 0.0
    %1588 = vmatpush1.msra.mxu0 0.0
    %1589 = vmatprep.subr.mxu0 0.0
    %1590 = vmatpush1.msra.mxu0 0.0
    %1591 = vmatprep.subr.mxu0 0.0
    %1592 = vmatpush1.msra.mxu0 0.0
    %1593 = vmatprep.subr.mxu0 0.0
    %1594 = vmatpush1.msra.mxu0 0.0
    %1595 = vmatprep.subr.mxu0 0.0
    %1596 = vmatpush1.msra.mxu0 0.0
    %1597 = vmatprep.subr.mxu0 0.0
    %1598 = vmatpush1.msra.mxu0 0.0
    %1599 = vmatprep.subr.mxu0 0.0
    %1600 = vmatpush1.msra.mxu0 0.0
    %1601 = vmatprep.subr.mxu0 0.0
    %1602 = vmatpush1.msra.mxu0 0.0
    %1603 = vmatprep.subr.mxu0 0.0
    %1604 = vmatpush1.msra.mxu0 0.0
    %1605 = vmatprep.subr.mxu0 0.0
    %1606 = vmatpush1.msra.mxu0 0.0
    %1607 = vmatprep.subr.mxu0 0.0
    %1608 = vmatpush1.msra.mxu0 0.0
    %1609 = vmatprep.subr.mxu0 0.0
    %1610 = vmatpush1.msra.mxu0 0.0
    %1611 = vmatprep.subr.mxu0 0.0
    %1612 = vmatpush1.msra.mxu0 0.0
    %1613 = vmatprep.subr.mxu0 0.0
    %1614 = vmatpush1.msra.mxu0 0.0
    %1615 = vmatprep.subr.mxu0 0.0
    %1616 = vmatpush1.msra.mxu0 0.0
    %1617 = vmatprep.subr.mxu0 0.0
    %1618 = vmatpush1.msra.mxu0 0.0
    %1619 = vmatprep.subr.mxu0 0.0
    %1620 = vmatpush1.msra.mxu0 0.0
    %1621 = vmatprep.subr.mxu0 0.0
    %1622 = vmatpush1.msra.mxu0 0.0
    %1623 = vmatprep.subr.mxu0 0.0
    %1624 = vmatpush1.msra.mxu0 0.0
    %1625 = vmatprep.subr.mxu0 0.0
    %1626 = vmatpush1.msra.mxu0 0.0
    %1627 = vmatprep.subr.mxu0 0.0
    %1628 = vmatpush1.msra.mxu0 0.0
    %1629 = vmatprep.mubr.f32.mxu0 0.0
    %1630 = vmatmul.mubr.f32.gmra.mrb[0].mxu0 %v1563
    %v1631 = vpop.f32.mrb[0].mxu0
    %v1632 = vadd.f32 %v1144, %v1631
    %v1633 = vpop.f32.mrb[0].mxu0
    %1634 = vdwg.mxu0
    %v1635 = vadd.f32 %v1137, %v1632
    %v1636 = vxor.u32 %v1635, 2147483648
    %v1637 = vmul.f32 %v1636, 1.442695
    %v1638 = vpow.pop %v1637
    %v1639 = vadd.f32 %v1638, 1.0
    %v1640 = vrcp.pop %v1639
    %v1641 = vmul.f32 1.0, %v1640
    %1643 = vrot.lane.b32.xlu0 %v1632, 64
    %v1644 = vpop.permute.xlu0 %1643
    %v1646 = vmul.f32 %v1641, %v1644
    %1648 = vrot.lane.b32.xlu0 %v1646, 64
    %v1649 = vpop.permute.xlu0 %1648
    %v1651 = vadd.f32 %v1137, %v1649
    %v1652 = vtanh.pop %v1651
    %v1653 = vsub.f32 1.0, %v1641
    %1655 = vrot.lane.b32.xlu0 %v1652, 96
    %v1656 = vpop.permute.xlu0 %1655
    %v1658 = vmul.f32 %v1653, %v1656
    %v1660 = vmul.f32 %v1641, %v1560
    %v1661 = vadd.f32 %v1658, %v1660
    %1663 = vrot.lane.b32.xlu0 %v1661, 96
    %v1664 = vpop.permute.xlu0 %1663
    %v1665 = vsel %vm193, %v1664, 0
    %1667 = vmatprep.subr.mxu0 0.0
    %1668 = vmatpush1.msra.mxu0 %v1043
    %1669 = vmatprep.subr.mxu0 0.0
    %1670 = vmatpush1.msra.mxu0 %v1044
    %1671 = vmatprep.subr.mxu0 0.0
    %1672 = vmatpush1.msra.mxu0 %v1045
    %1673 = vmatprep.subr.mxu0 0.0
    %1674 = vmatpush1.msra.mxu0 %v1046
    %1675 = vmatprep.subr.mxu0 0.0
    %1676 = vmatpush1.msra.mxu0 0.0
    %1677 = vmatprep.subr.mxu0 0.0
    %1678 = vmatpush1.msra.mxu0 0.0
    %1679 = vmatprep.subr.mxu0 0.0
    %1680 = vmatpush1.msra.mxu0 0.0
    %1681 = vmatprep.subr.mxu0 0.0
    %1682 = vmatpush1.msra.mxu0 0.0
    %1683 = vmatprep.subr.mxu0 0.0
    %1684 = vmatpush1.msra.mxu0 0.0
    %1685 = vmatprep.subr.mxu0 0.0
    %1686 = vmatpush1.msra.mxu0 0.0
    %1687 = vmatprep.subr.mxu0 0.0
    %1688 = vmatpush1.msra.mxu0 0.0
    %1689 = vmatprep.subr.mxu0 0.0
    %1690 = vmatpush1.msra.mxu0 0.0
    %1691 = vmatprep.subr.mxu0 0.0
    %1692 = vmatpush1.msra.mxu0 0.0
    %1693 = vmatprep.subr.mxu0 0.0
    %1694 = vmatpush1.msra.mxu0 0.0
    %1695 = vmatprep.subr.mxu0 0.0
    %1696 = vmatpush1.msra.mxu0 0.0
    %1697 = vmatprep.subr.mxu0 0.0
    %1698 = vmatpush1.msra.mxu0 0.0
    %1699 = vmatprep.subr.mxu0 0.0
    %1700 = vmatpush1.msra.mxu0 0.0
    %1701 = vmatprep.subr.mxu0 0.0
    %1702 = vmatpush1.msra.mxu0 0.0
    %1703 = vmatprep.subr.mxu0 0.0
    %1704 = vmatpush1.msra.mxu0 0.0
    %1705 = vmatprep.subr.mxu0 0.0
    %1706 = vmatpush1.msra.mxu0 0.0
    %1707 = vmatprep.subr.mxu0 0.0
    %1708 = vmatpush1.msra.mxu0 0.0
    %1709 = vmatprep.subr.mxu0 0.0
    %1710 = vmatpush1.msra.mxu0 0.0
    %1711 = vmatprep.subr.mxu0 0.0
    %1712 = vmatpush1.msra.mxu0 0.0
    %1713 = vmatprep.subr.mxu0 0.0
    %1714 = vmatpush1.msra.mxu0 0.0
    %1715 = vmatprep.subr.mxu0 0.0
    %1716 = vmatpush1.msra.mxu0 0.0
    %1717 = vmatprep.subr.mxu0 0.0
    %1718 = vmatpush1.msra.mxu0 0.0
    %1719 = vmatprep.subr.mxu0 0.0
    %1720 = vmatpush1.msra.mxu0 0.0
    %1721 = vmatprep.subr.mxu0 0.0
    %1722 = vmatpush1.msra.mxu0 0.0
    %1723 = vmatprep.subr.mxu0 0.0
    %1724 = vmatpush1.msra.mxu0 0.0
    %1725 = vmatprep.subr.mxu0 0.0
    %1726 = vmatpush1.msra.mxu0 0.0
    %1727 = vmatprep.subr.mxu0 0.0
    %1728 = vmatpush1.msra.mxu0 0.0
    %1729 = vmatprep.subr.mxu0 0.0
    %1730 = vmatpush1.msra.mxu0 0.0
    %1731 = vmatprep.mubr.f32.mxu0 0.0
    %1732 = vmatmul.mubr.f32.gmra.mrb[0].mxu0 %v1665
    %v1733 = vpop.f32.mrb[0].mxu0
    %v1734 = vadd.f32 %v1144, %v1733
    %v1735 = vpop.f32.mrb[0].mxu0
    %1736 = vdwg.mxu0
    %v1738 = vrot.slane %v1734, 6
    %v1740 = vadd.f32 %v1137, %v1738
    %v1741 = vxor.u32 %v1740, 2147483648
    %v1742 = vmul.f32 %v1741, 1.442695
    %v1743 = vpow.pop %v1742
    %v1744 = vadd.f32 %v1743, 1.0
    %v1745 = vrcp.pop %v1744
    %v1746 = vmul.f32 1.0, %v1745
    %1747 = vrot.lane.b32.xlu0 %v1738, 64
    %v1748 = vpop.permute.xlu0 %1747
    %v1750 = vmul.f32 %v1746, %v1748
    %1752 = vrot.lane.b32.xlu0 %v1750, 64
    %v1753 = vpop.permute.xlu0 %1752
    %v1755 = vadd.f32 %v1137, %v1753
    %v1756 = vtanh.pop %v1755
    %v1757 = vsub.f32 1.0, %v1746
    %1759 = vrot.lane.b32.xlu0 %v1756, 96
    %v1760 = vpop.permute.xlu0 %1759
    %v1762 = vmul.f32 %v1757, %v1760
    %v1763 = vrot.slane %v1661, 6
    %v1765 = vmul.f32 %v1746, %v1763
    %v1766 = vadd.f32 %v1762, %v1765
    %v1768 = vrot.slane %v1766, 2
    %1769 = vrot.lane.b32.xlu0 %v1768, 96
    %v1770 = vpop.permute.xlu0 %1769
    %v1771 = vsel %vm193, %v1770, 0
    %1773 = vmatprep.subr.mxu0 0.0
    %1774 = vmatpush1.msra.mxu0 %v1043
    %1775 = vmatprep.subr.mxu0 0.0
    %1776 = vmatpush1.msra.mxu0 %v1044
    %1777 = vmatprep.subr.mxu0 0.0
    %1778 = vmatpush1.msra.mxu0 %v1045
    %1779 = vmatprep.subr.mxu0 0.0
    %1780 = vmatpush1.msra.mxu0 %v1046
    %1781 = vmatprep.subr.mxu0 0.0
    %1782 = vmatpush1.msra.mxu0 0.0
    %1783 = vmatprep.subr.mxu0 0.0
    %1784 = vmatpush1.msra.mxu0 0.0
    %1785 = vmatprep.subr.mxu0 0.0
    %1786 = vmatpush1.msra.mxu0 0.0
    %1787 = vmatprep.subr.mxu0 0.0
    %1788 = vmatpush1.msra.mxu0 0.0
    %1789 = vmatprep.subr.mxu0 0.0
    %1790 = vmatpush1.msra.mxu0 0.0
    %1791 = vmatprep.subr.mxu0 0.0
    %1792 = vmatpush1.msra.mxu0 0.0
    %1793 = vmatprep.subr.mxu0 0.0
    %1794 = vmatpush1.msra.mxu0 0.0
    %1795 = vmatprep.subr.mxu0 0.0
    %1796 = vmatpush1.msra.mxu0 0.0
    %1797 = vmatprep.subr.mxu0 0.0
    %1798 = vmatpush1.msra.mxu0 0.0
    %1799 = vmatprep.subr.mxu0 0.0
    %1800 = vmatpush1.msra.mxu0 0.0
    %1801 = vmatprep.subr.mxu0 0.0
    %1802 = vmatpush1.msra.mxu0 0.0
    %1803 = vmatprep.subr.mxu0 0.0
    %1804 = vmatpush1.msra.mxu0 0.0
    %1805 = vmatprep.subr.mxu0 0.0
    %1806 = vmatpush1.msra.mxu0 0.0
    %1807 = vmatprep.subr.mxu0 0.0
    %1808 = vmatpush1.msra.mxu0 0.0
    %1809 = vmatprep.subr.mxu0 0.0
    %1810 = vmatpush1.msra.mxu0 0.0
    %1811 = vmatprep.subr.mxu0 0.0
    %1812 = vmatpush1.msra.mxu0 0.0
    %1813 = vmatprep.subr.mxu0 0.0
    %1814 = vmatpush1.msra.mxu0 0.0
    %1815 = vmatprep.subr.mxu0 0.0
    %1816 = vmatpush1.msra.mxu0 0.0
    %1817 = vmatprep.subr.mxu0 0.0
    %1818 = vmatpush1.msra.mxu0 0.0
    %1819 = vmatprep.subr.mxu0 0.0
    %1820 = vmatpush1.msra.mxu0 0.0
    %1821 = vmatprep.subr.mxu0 0.0
    %1822 = vmatpush1.msra.mxu0 0.0
    %1823 = vmatprep.subr.mxu0 0.0
    %1824 = vmatpush1.msra.mxu0 0.0
    %1825 = vmatprep.subr.mxu0 0.0
    %1826 = vmatpush1.msra.mxu0 0.0
    %1827 = vmatprep.subr.mxu0 0.0
    %1828 = vmatpush1.msra.mxu0 0.0
    %1829 = vmatprep.subr.mxu0 0.0
    %1830 = vmatpush1.msra.mxu0 0.0
    %1831 = vmatprep.subr.mxu0 0.0
    %1832 = vmatpush1.msra.mxu0 0.0
    %1833 = vmatprep.subr.mxu0 0.0
    %1834 = vmatpush1.msra.mxu0 0.0
    %1835 = vmatprep.subr.mxu0 0.0
    %1836 = vmatpush1.msra.mxu0 0.0
    %1837 = vmatprep.mubr.f32.mxu0 0.0
    %1838 = vmatmul.mubr.f32.gmra.mrb[0].mxu0 %v1771
    %v1839 = vpop.f32.mrb[0].mxu0
    %v1840 = vadd.f32 %v1144, %v1839
    %v1841 = vpop.f32.mrb[0].mxu0
    %1842 = vdwg.mxu0
    %v1844 = vrot.slane %v1840, 4
    %v1846 = vadd.f32 %v1137, %v1844
    %v1847 = vxor.u32 %v1846, 2147483648
    %v1848 = vmul.f32 %v1847, 1.442695
    %v1849 = vpow.pop %v1848
    %v1850 = vadd.f32 %v1849, 1.0
    %v1851 = vrcp.pop %v1850
    %v1852 = vmul.f32 1.0, %v1851
    %1853 = vrot.lane.b32.xlu0 %v1844, 64
    %v1854 = vpop.permute.xlu0 %1853
    %v1856 = vmul.f32 %v1852, %v1854
    %1858 = vrot.lane.b32.xlu0 %v1856, 64
    %v1859 = vpop.permute.xlu0 %1858
    %v1861 = vadd.f32 %v1137, %v1859
    %v1862 = vtanh.pop %v1861
    %v1863 = vsub.f32 1.0, %v1852
    %1865 = vrot.lane.b32.xlu0 %v1862, 96
    %v1866 = vpop.permute.xlu0 %1865
    %v1868 = vmul.f32 %v1863, %v1866
    %v1869 = vrot.slane %v1766, 6
    %v1871 = vmul.f32 %v1852, %v1869
    %v1872 = vadd.f32 %v1868, %v1871
    %v1874 = vrot.slane %v1872, 4
    %1875 = vrot.lane.b32.xlu0 %v1874, 96
    %v1876 = vpop.permute.xlu0 %1875
    %v1877 = vsel %vm193, %v1876, 0
    %1879 = vmatprep.subr.mxu0 0.0
    %1880 = vmatpush1.msra.mxu0 %v1043
    %1881 = vmatprep.subr.mxu0 0.0
    %1882 = vmatpush1.msra.mxu0 %v1044
    %1883 = vmatprep.subr.mxu0 0.0
    %1884 = vmatpush1.msra.mxu0 %v1045
    %1885 = vmatprep.subr.mxu0 0.0
    %1886 = vmatpush1.msra.mxu0 %v1046
    %1887 = vmatprep.subr.mxu0 0.0
    %1888 = vmatpush1.msra.mxu0 0.0
    %1889 = vmatprep.subr.mxu0 0.0
    %1890 = vmatpush1.msra.mxu0 0.0
    %1891 = vmatprep.subr.mxu0 0.0
    %1892 = vmatpush1.msra.mxu0 0.0
    %1893 = vmatprep.subr.mxu0 0.0
    %1894 = vmatpush1.msra.mxu0 0.0
    %1895 = vmatprep.subr.mxu0 0.0
    %1896 = vmatpush1.msra.mxu0 0.0
    %1897 = vmatprep.subr.mxu0 0.0
    %1898 = vmatpush1.msra.mxu0 0.0
    %1899 = vmatprep.subr.mxu0 0.0
    %1900 = vmatpush1.msra.mxu0 0.0
    %1901 = vmatprep.subr.mxu0 0.0
    %1902 = vmatpush1.msra.mxu0 0.0
    %1903 = vmatprep.subr.mxu0 0.0
    %1904 = vmatpush1.msra.mxu0 0.0
    %1905 = vmatprep.subr.mxu0 0.0
    %1906 = vmatpush1.msra.mxu0 0.0
    %1907 = vmatprep.subr.mxu0 0.0
    %1908 = vmatpush1.msra.mxu0 0.0
    %1909 = vmatprep.subr.mxu0 0.0
    %1910 = vmatpush1.msra.mxu0 0.0
    %1911 = vmatprep.subr.mxu0 0.0
    %1912 = vmatpush1.msra.mxu0 0.0
    %1913 = vmatprep.subr.mxu0 0.0
    %1914 = vmatpush1.msra.mxu0 0.0
    %1915 = vmatprep.subr.mxu0 0.0
    %1916 = vmatpush1.msra.mxu0 0.0
    %1917 = vmatprep.subr.mxu0 0.0
    %1918 = vmatpush1.msra.mxu0 0.0
    %1919 = vmatprep.subr.mxu0 0.0
    %1920 = vmatpush1.msra.mxu0 0.0
    %1921 = vmatprep.subr.mxu0 0.0
    %1922 = vmatpush1.msra.mxu0 0.0
    %1923 = vmatprep.subr.mxu0 0.0
    %1924 = vmatpush1.msra.mxu0 0.0
    %1925 = vmatprep.subr.mxu0 0.0
    %1926 = vmatpush1.msra.mxu0 0.0
    %1927 = vmatprep.subr.mxu0 0.0
    %1928 = vmatpush1.msra.mxu0 0.0
    %1929 = vmatprep.subr.mxu0 0.0
    %1930 = vmatpush1.msra.mxu0 0.0
    %1931 = vmatprep.subr.mxu0 0.0
    %1932 = vmatpush1.msra.mxu0 0.0
    %1933 = vmatprep.subr.mxu0 0.0
    %1934 = vmatpush1.msra.mxu0 0.0
    %1935 = vmatprep.subr.mxu0 0.0
    %1936 = vmatpush1.msra.mxu0 0.0
    %1937 = vmatprep.subr.mxu0 0.0
    %1938 = vmatpush1.msra.mxu0 0.0
    %1939 = vmatprep.subr.mxu0 0.0
    %1940 = vmatpush1.msra.mxu0 0.0
    %1941 = vmatprep.subr.mxu0 0.0
    %1942 = vmatpush1.msra.mxu0 0.0
    %1943 = vmatprep.mubr.f32.mxu0 0.0
    %1944 = vmatmul.mubr.f32.gmra.mrb[0].mxu0 %v1877
    %v1945 = vpop.f32.mrb[0].mxu0
    %v1946 = vadd.f32 %v1144, %v1945
    %v1947 = vpop.f32.mrb[0].mxu0
    %1948 = vdwg.mxu0
    %v1950 = vrot.slane %v1946, 2
    %v1952 = vadd.f32 %v1137, %v1950
    %v1953 = vxor.u32 %v1952, 2147483648
    %v1954 = vmul.f32 %v1953, 1.442695
    %v1955 = vpow.pop %v1954
    %v1956 = vadd.f32 %v1955, 1.0
    %v1957 = vrcp.pop %v1956
    %v1958 = vmul.f32 1.0, %v1957
    %1959 = vrot.lane.b32.xlu0 %v1950, 64
    %v1960 = vpop.permute.xlu0 %1959
    %v1962 = vmul.f32 %v1958, %v1960
    %1964 = vrot.lane.b32.xlu0 %v1962, 64
    %v1965 = vpop.permute.xlu0 %1964
    %v1967 = vadd.f32 %v1137, %v1965
    %v1968 = vtanh.pop %v1967
    %v1969 = vsub.f32 1.0, %v1958
    %1971 = vrot.lane.b32.xlu0 %v1968, 96
    %v1972 = vpop.permute.xlu0 %1971
    %v1974 = vmul.f32 %v1969, %v1972
    %v1975 = vrot.slane %v1872, 6
    %v1977 = vmul.f32 %v1958, %v1975
    %v1978 = vadd.f32 %v1974, %v1977
    %v1979 = vld [vmem:[%s9] sm:$0xff]
    %v1980 = vld [vmem:[%s9 + $0x8] sm:$0xff]
    %v1981 = vld [vmem:[%s9 + $0x10] sm:$0xff]
    %v1982 = vld [vmem:[%s9 + $0x18] sm:$0xff]
    %v1983 = vld [vmem:[%s10] sm:$0x1]
    %v1985 = vlaneseq
    %v1986 = vshrl.u32 %v1985, 7
    %v1987 = vsub.s32 0, %v1986
    %v1988 = vrot.slane %v1983, %v1987
    %v1991 = vrot.slane %v1978, 6
    %1992 = vrot.lane.b32.xlu0 %v1991, 96
    %v1993 = vpop.permute.xlu0 %1992
    %v1994 = vsel %vm193, %v1993, 0
    %1996 = vmatprep.subr.mxu0 0.0
    %1997 = vmatpush1.msra.mxu0 %v1979
    %1998 = vmatprep.subr.mxu0 0.0
    %1999 = vmatpush1.msra.mxu0 %v1980
    %2000 = vmatprep.subr.mxu0 0.0
    %2001 = vmatpush1.msra.mxu0 %v1981
    %2002 = vmatprep.subr.mxu0 0.0
    %2003 = vmatpush1.msra.mxu0 %v1982
    %2004 = vmatprep.subr.mxu0 0.0
    %2005 = vmatpush1.msra.mxu0 0.0
    %2006 = vmatprep.subr.mxu0 0.0
    %2007 = vmatpush1.msra.mxu0 0.0
    %2008 = vmatprep.subr.mxu0 0.0
    %2009 = vmatpush1.msra.mxu0 0.0
    %2010 = vmatprep.subr.mxu0 0.0
    %2011 = vmatpush1.msra.mxu0 0.0
    %2012 = vmatprep.subr.mxu0 0.0
    %2013 = vmatpush1.msra.mxu0 0.0
    %2014 = vmatprep.subr.mxu0 0.0
    %2015 = vmatpush1.msra.mxu0 0.0
    %2016 = vmatprep.subr.mxu0 0.0
    %2017 = vmatpush1.msra.mxu0 0.0
    %2018 = vmatprep.subr.mxu0 0.0
    %2019 = vmatpush1.msra.mxu0 0.0
    %2020 = vmatprep.subr.mxu0 0.0
    %2021 = vmatpush1.msra.mxu0 0.0
    %2022 = vmatprep.subr.mxu0 0.0
    %2023 = vmatpush1.msra.mxu0 0.0
    %2024 = vmatprep.subr.mxu0 0.0
    %2025 = vmatpush1.msra.mxu0 0.0
    %2026 = vmatprep.subr.mxu0 0.0
    %2027 = vmatpush1.msra.mxu0 0.0
    %2028 = vmatprep.subr.mxu0 0.0
    %2029 = vmatpush1.msra.mxu0 0.0
    %2030 = vmatprep.subr.mxu0 0.0
    %2031 = vmatpush1.msra.mxu0 0.0
    %2032 = vmatprep.subr.mxu0 0.0
    %2033 = vmatpush1.msra.mxu0 0.0
    %2034 = vmatprep.subr.mxu0 0.0
    %2035 = vmatpush1.msra.mxu0 0.0
    %2036 = vmatprep.subr.mxu0 0.0
    %2037 = vmatpush1.msra.mxu0 0.0
    %2038 = vmatprep.subr.mxu0 0.0
    %2039 = vmatpush1.msra.mxu0 0.0
    %2040 = vmatprep.subr.mxu0 0.0
    %2041 = vmatpush1.msra.mxu0 0.0
    %2042 = vmatprep.subr.mxu0 0.0
    %2043 = vmatpush1.msra.mxu0 0.0
    %2044 = vmatprep.subr.mxu0 0.0
    %2045 = vmatpush1.msra.mxu0 0.0
    %2046 = vmatprep.subr.mxu0 0.0
    %2047 = vmatpush1.msra.mxu0 0.0
    %2048 = vmatprep.subr.mxu0 0.0
    %2049 = vmatpush1.msra.mxu0 0.0
    %2050 = vmatprep.subr.mxu0 0.0
    %2051 = vmatpush1.msra.mxu0 0.0
    %2052 = vmatprep.subr.mxu0 0.0
    %2053 = vmatpush1.msra.mxu0 0.0
    %2054 = vmatprep.subr.mxu0 0.0
    %2055 = vmatpush1.msra.mxu0 0.0
    %2056 = vmatprep.subr.mxu0 0.0
    %2057 = vmatpush1.msra.mxu0 0.0
    %2058 = vmatprep.subr.mxu0 0.0
    %2059 = vmatpush1.msra.mxu0 0.0
    %2060 = vmatprep.mubr.f32.mxu0 0.0
    %2061 = vmatmul.mubr.f32.gmra.mrb[0].mxu0 %v1994
    %v2062 = vpop.f32.mrb[0].mxu0
    %v2063 = vadd.f32 %v1988, %v2062
    %v2064 = vpop.f32.mrb[0].mxu0
    %2065 = vdwg.mxu0
    %v2066 = vlaneseq
    %v2067 = vand.u32 %v2066, 127
    %vm2068 = vcmp.lt.s32.totalorder %v2067, 4
    %v2069 = vmax.f32 %v2063, 0.0
    %vm2070 = vcmp.ne.f32.partialorder %v2063, %v2063
    %v2071 = vadd.f32 %v2063, 0.0
    %v2072 = vand.u32 2147483647, %v2063
    %v2073 = vsub.f32 0.0, %v2072
    %v2074 = vmul.f32 %v2073, 1.442695
    %v2075 = vpow.pop %v2074
    %v2076 = vadd.f32 %v2075, 1.0
    %v2077 = vlog2.pop %v2076
    %v2078 = vmul.f32 %v2077, 0.6931472
    %v2079 = vmul.f32 -0.5, %v2075
    %v2080 = vadd.f32 %v2079, 1.0
    %v2081 = vmul.f32 %v2080, %v2075
    %v2082 = vand.u32 2147483647, %v2075
    %vm2083 = vcmp.lt.f32.partialorder %v2082, 0.0004427343
    %v2084 = vsel %vm2083, %v2081, %v2078
    %v2085 = vadd.f32 %v2069, %v2084
    %v2086 = vsel %vm2070, %v2071, %v2085
    %v2087 = vsel %vm2068, %v2063, %v2086
    %vm2088 = vcmask 58368
    %2089 = vst.msk [vmem:[%s11] sm:$0x3] %vm2088, %v2087
    // Predicated region
    $region62: #{factor_encoder_forward.1} parent=1 // pred_check
      _
    $region63: #{factor_encoder_forward.1} parent=1 // pred_check_branch
      %2091 = sbr.rel (0) target = $region65
    $region64: #{factor_encoder_forward.1} parent=1 // pred_region
      _
    $region65: #{factor_encoder_forward.1} parent=1 // pred_fallthru
      _
    // Predicated region
    $region66: #{factor_encoder_forward.1} parent=1 // pred_check
      _
    $region67: #{factor_encoder_forward.1} parent=1 // pred_check_branch
      %2093 = sbr.rel (0) target = $region69
    $region68: #{factor_encoder_forward.1} parent=1 // pred_region
      _
    $region69: #{factor_encoder_forward.1} parent=1 // pred_fallthru
      _
    %2094 = vsyncpa [#allocation3], 1
    %2095 = vsyncpa [#allocation5], 1
    %2096 = vsyncpa [#allocation8], 1

</llo_original>
